<compile_context>
chip_gen: v5e
topology: v5e:2x2
jax: 0.10.0
libtpu: 0.0.40
codegen_flags: <defaults>
</compile_context>

<pallas_src>
import jax
import jax.numpy as jnp
from jax.experimental import pallas as pl
from jax.experimental.pallas import tpu as pltpu

NUM_CLASSES = 5
L_IN = 30          # 30 -conv7-> 24 -conv5-> 20 -pool-> 10 -conv3-> 8 -pool-> 4
C_IN = 6
BATCH = 2
BN_EPS = 1e-5

L1 = L_IN - 7 + 1          # 24
L2 = L1 - 5 + 1            # 20
L2P = L2 // 2              # 10
L3 = L2P - 3 + 1           # 8
L3P = L3 // 2              # 4


def _num_tensorcores():
    """Grid steps should match TensorCores per chip: 2 on v7x, else 1."""
    try:
        kind = jax.devices()[0].device_kind.lower()
    except Exception:
        return 1
    return 2 if ("v7" in kind or "7x" in kind) else 1


def net_kernel(x_ref,
               w1_ref, h1_ref,
               w2_ref, h2_ref,
               w3_ref, h3_ref,
               fw1_ref, fb1_ref, fw2_ref, fb2_ref, fw3_ref, fb3_ref,
               out_ref):
    b = out_ref.shape[1]                      # batch tile size (static)

    # ---- conv1: one batched im2col matmul, M = 24*b.
    # Row ordering (built in the wrapper): r*b + s, with position ranks
    # r<12 -> conv1 position 2r (even), r>=12 -> position 2(r-12)+1 (odd).
    y = jnp.dot(x_ref[...], w1_ref[...], preferred_element_type=jnp.float32)   # (24b, 128)
    y16 = jnp.maximum(y + h1_ref[...], 0.0).astype(jnp.bfloat16)               # cast once

    # ---- conv2 + MaxPool1d(2,2): K-concat the 5 taps, separate even/odd
    # conv2 output positions (contiguous row ranges thanks to the ordering),
    # then the pool is a single elementwise maximum of the two accumulators.
    ev, od = [], []
    for k in range(5):
        if k % 2 == 0:
            e0, o0 = k // 2, 12 + k // 2
        else:
            e0, o0 = 12 + k // 2, k // 2 + 1
        ev.append(y16[e0 * b:(e0 + L2P) * b, :])
        od.append(y16[o0 * b:(o0 + L2P) * b, :])
    lhs_e = jnp.concatenate(ev, axis=-1)                                        # (10b, 640)
    lhs_o = jnp.concatenate(od, axis=-1)                                        # (10b, 640)
    z_e = jnp.dot(lhs_e, w2_ref[...], preferred_element_type=jnp.float32)       # (10b, 256)
    z_o = jnp.dot(lhs_o, w2_ref[...], preferred_element_type=jnp.float32)       # (10b, 256)
    p16 = jnp.maximum(jnp.maximum(z_e, z_o) + h2_ref[...], 0.0).astype(jnp.bfloat16)

    # ---- conv3: 3 taps K-concatenated into a single dot, M = 8*b.
    lhs3 = jnp.concatenate([p16[k * b:(k + L3) * b, :] for k in range(3)], axis=-1)  # (8b, 768)
    acc3 = jnp.dot(lhs3, w3_ref[...], preferred_element_type=jnp.float32)            # (8b, 128)

    # ---- MaxPool1d(2,2) + channel-major flatten: pair maxima of contiguous
    # row blocks, shift+ReLU epilogue, lane-concat (128-aligned) to (b, 512).
    acts = []
    for t in range(L3P):
        pooled = jnp.maximum(acc3[(2 * t) * b:(2 * t + 1) * b, :],
                             acc3[(2 * t + 1) * b:(2 * t + 2) * b, :])          # (b, 128)
        acts.append(jnp.maximum(pooled + h3_ref[...], 0.0))
    flat = jnp.concatenate(acts, axis=-1).astype(jnp.bfloat16)                  # (b, 512)

    # ---- FC stack, batched over the tile (M = b).
    h = jnp.dot(flat, fw1_ref[...], preferred_element_type=jnp.float32) + fb1_ref[...]
    h = jnp.maximum(h, 0.0)
    # TODO(synk): Dropout(0.5) is identity in eval mode; training-mode dropout not implemented.
    h = jnp.dot(h.astype(jnp.bfloat16), fw2_ref[...],
                preferred_element_type=jnp.float32) + fb2_ref[...]
    h = jnp.maximum(h, 0.0)
    out = jnp.dot(h.astype(jnp.bfloat16), fw3_ref[...],
                  preferred_element_type=jnp.float32) + fb3_ref[...]            # (b, 5)
    out_ref[0] = out                                                            # single store


def net_forward(x_ncw, params):
    (w1, h1, w2, h2, w3, h3, fw1, fb1, fw2, fb2, fw3, fb3) = params
    n = x_ncw.shape[0]
    x_nlc = jnp.transpose(x_ncw, (0, 2, 1)).astype(jnp.float32)                 # (N, 30, 6)

    # One grid step per TensorCore (2 on v7x, 1 on v5e/v6e); fall back to a
    # single step if the batch doesn't split evenly.
    n_tc = _num_tensorcores()
    steps = n_tc if (n_tc > 1 and n % n_tc == 0) else 1
    b_tile = n // steps

    # Wrapper-side im2col for conv1 (layout plumbing only, no arithmetic):
    # column index is j*6 + c; conv1 output positions are permuted to
    # [0,2,...,22, 1,3,...,23]; inside each chunk rows are ordered
    # (position-rank major, sample minor) so every conv tap in the kernel
    # slices a contiguous 2-D row range.
    perm = jnp.concatenate([jnp.arange(0, L1, 2), jnp.arange(1, L1, 2)])        # (24,)
    win = perm[:, None] + jnp.arange(7)[None, :]                                # (24, 7)
    cols = x_nlc[:, win, :].reshape(n, L1, 7 * C_IN)                            # (N, 24, 42)
    cols = (cols.reshape(steps, b_tile, L1, 7 * C_IN)
                .transpose(0, 2, 1, 3)
                .reshape(steps * L1 * b_tile, 7 * C_IN)
                .astype(jnp.bfloat16))

    def const_spec(arr):
        nd = arr.ndim
        return pl.BlockSpec(arr.shape, lambda i, _nd=nd: (0,) * _nd)

    weights = (w1, h1, w2, h2, w3, h3, fw1, fb1, fw2, fb2, fw3, fb3)
    in_specs = [pl.BlockSpec((L1 * b_tile, 7 * C_IN), lambda i: (i, 0))]
    in_specs += [const_spec(w) for w in weights]
    # Weight footprint is ~1 MB (bf16) -> default double buffering is fine on
    # every generation; constant index maps avoid re-fetch across steps.

    out = pl.pallas_call(
        net_kernel,
        out_shape=jax.ShapeDtypeStruct((steps, b_tile, NUM_CLASSES), jnp.float32),
        grid=(steps,),
        in_specs=in_specs,
        out_specs=pl.BlockSpec((1, b_tile, NUM_CLASSES), lambda i: (i, 0, 0)),
        compiler_params=pltpu.CompilerParams(dimension_semantics=("parallel",)),
    )(cols, *weights)
    return out.reshape(n, NUM_CLASSES)


def init_params(key, num_classes):
    k1, k2, k3, k4, k5, k6 = jax.random.split(key, 6)

    def conv_bn_raw(key, in_c, out_c, ksize):
        kw, kb, kg, kt, km, kv = jax.random.split(key, 6)
        bound = 1.0 / (in_c * ksize) ** 0.5
        w = jax.random.uniform(kw, (out_c, in_c, ksize), jnp.float32, -bound, bound)
        b = jax.random.uniform(kb, (out_c,), jnp.float32, -bound, bound)
        gamma = 1.0 + 0.05 * jax.random.normal(kg, (out_c,), jnp.float32)
        beta = 0.05 * jax.random.normal(kt, (out_c,), jnp.float32)
        r_mean = 0.05 * jax.random.normal(km, (out_c,), jnp.float32)
        r_var = 1.0 + 0.05 * jnp.abs(jax.random.normal(kv, (out_c,), jnp.float32))
        return (w, b, gamma, beta, r_mean, r_var)

    def linear_raw(key, in_c, out_c):
        kw, kb = jax.random.split(key)
        bound = 1.0 / in_c ** 0.5
        w = jax.random.uniform(kw, (out_c, in_c), jnp.float32, -bound, bound)
        b = jax.random.uniform(kb, (out_c,), jnp.float32, -bound, bound)
        return w, b

    raw = dict(
        conv1=conv_bn_raw(k1, C_IN, 128, 7),
        conv2=conv_bn_raw(k2, 128, 256, 5),
        conv3=conv_bn_raw(k3, 256, 128, 3),
        fc1=linear_raw(k4, 128 * L3P, 256),
        fc2=linear_raw(k5, 256, 64),
        fc3=linear_raw(k6, 64, num_classes),
    )

    def fold(conv):
        w, b, gamma, beta, r_mean, r_var = conv
        scale = gamma / jnp.sqrt(r_var + BN_EPS)
        shift = beta + scale * (b - r_mean)                      # conv bias folded into BN shift
        w_kio = jnp.transpose(w, (2, 1, 0)) * scale[None, None, :]  # (k, in, out), BN scale folded
        return w_kio, shift[None, :]

    w1_kio, h1 = fold(raw["conv1"])     # (7, 6, 128)
    w2_kio, h2 = fold(raw["conv2"])     # (5, 128, 256)
    w3_kio, h3 = fold(raw["conv3"])     # (3, 256, 128)
    w1 = w1_kio.reshape(7 * C_IN, 128).astype(jnp.bfloat16)      # im2col weight, row j*6 + c
    w2k = w2_kio.reshape(5 * 128, 256).astype(jnp.bfloat16)      # K-concat taps, row k*128 + c
    w3k = w3_kio.reshape(3 * 256, 128).astype(jnp.bfloat16)      # K-concat taps, row k*256 + c

    W1, B1 = raw["fc1"]
    W2, B2 = raw["fc2"]
    W3, B3 = raw["fc3"]
    # Permute FC1 so the kernel's (position, channel) lane-concat order (index
    # t*128 + c) matches PyTorch's channel-major flatten (index c*4 + t).
    fw1 = (W1.reshape(256, 128, L3P).transpose(2, 1, 0)
             .reshape(128 * L3P, 256).astype(jnp.bfloat16))

    params = (w1, h1, w2k, h2, w3k, h3,
              fw1, B1[None, :],
              W2.T.astype(jnp.bfloat16), B2[None, :],
              W3.T.astype(jnp.bfloat16), B3[None, :])
    return params, raw


def reference_forward(x_ncw, raw):
    """Plain-JAX f32 reference matching the PyTorch module in eval mode."""
    def conv_bn_relu(x_lc, conv):
        w, b, gamma, beta, r_mean, r_var = conv
        ksize = w.shape[-1]
        l_out = x_lc.shape[0] - ksize + 1
        acc = jnp.zeros((l_out, w.shape[0]), jnp.float32)
        for k in range(ksize):
            acc = acc + x_lc[k:k + l_out, :] @ w[:, :, k].T
        z = acc + b[None, :]
        y = (z - r_mean[None, :]) * (gamma[None, :] / jnp.sqrt(r_var[None, :] + BN_EPS)) + beta[None, :]
        return jnp.maximum(y, 0.0)

    def pool(x_lc):
        return jnp.maximum(x_lc[0::2, :], x_lc[1::2, :])

    W1, B1 = raw["fc1"]
    W2, B2 = raw["fc2"]
    W3, B3 = raw["fc3"]
    outs = []
    for i in range(x_ncw.shape[0]):
        x = x_ncw[i].T.astype(jnp.float32)            # (30, 6)
        x = conv_bn_relu(x, raw["conv1"])             # (24, 128)
        x = conv_bn_relu(x, raw["conv2"])             # (20, 256)
        x = pool(x)                                   # (10, 256)
        x = conv_bn_relu(x, raw["conv3"])             # (8, 128)
        x = pool(x)                                   # (4, 128)
        flat = x.T.reshape(-1)                        # channel-major flatten (c*4 + t)
        h = jnp.maximum(flat @ W1.T + B1, 0.0)
        h = jnp.maximum(h @ W2.T + B2, 0.0)
        outs.append(h @ W3.T + B3)
    return jnp.stack(outs)


if __name__ == "__main__":
    key = jax.random.PRNGKey(0)
    kp, kx = jax.random.split(key)
    params, raw = init_params(kp, NUM_CLASSES)
    x = jax.random.normal(kx, (BATCH, C_IN, L_IN), jnp.float32)   # PyTorch NCW input
    out = net_forward(x, params)
    jax.block_until_ready(out)
    assert out.shape == (BATCH, NUM_CLASSES)
    ref = reference_forward(x, raw)
    err = float(jnp.max(jnp.abs(out - ref)))
    assert err < 5e-2, f"kernel/reference mismatch: max abs err {err}"
    print("KERNEL_OK")
</pallas_src>

<mosaic_0001>
module attributes {stable_mosaic.version = 11 : i64} {
  func.func @net_kernel(%arg0: i32, %arg1: memref<48x42xbf16, #tpu.memory_space<vmem>>, %arg2: memref<42x128xbf16, #tpu.memory_space<vmem>>, %arg3: memref<1x128xf32, #tpu.memory_space<vmem>>, %arg4: memref<640x256xbf16, #tpu.memory_space<vmem>>, %arg5: memref<1x256xf32, #tpu.memory_space<vmem>>, %arg6: memref<768x128xbf16, #tpu.memory_space<vmem>>, %arg7: memref<1x128xf32, #tpu.memory_space<vmem>>, %arg8: memref<512x256xbf16, #tpu.memory_space<vmem>>, %arg9: memref<1x256xf32, #tpu.memory_space<vmem>>, %arg10: memref<256x64xbf16, #tpu.memory_space<vmem>>, %arg11: memref<1x64xf32, #tpu.memory_space<vmem>>, %arg12: memref<64x5xbf16, #tpu.memory_space<vmem>>, %arg13: memref<1x5xf32, #tpu.memory_space<vmem>>, %arg14: memref<1x2x5xf32, #tpu.memory_space<vmem>>) attributes {dimension_semantics = [#tpu.dimension_semantics<parallel>], iteration_bounds = array<i64: 1>, scalar_prefetch = 0 : i64, scratch_operands = 0 : i64, tpu.core_type = #tpu.core_type<tc>, window_params = [{transform_indices = @transform_0, window_bounds = array<i64: 48, 42>}, {pipeline_mode = #tpu.pipeline_mode<synchronous>, transform_indices = @transform_1, window_bounds = array<i64: 42, 128>}, {pipeline_mode = #tpu.pipeline_mode<synchronous>, transform_indices = @transform_2, window_bounds = array<i64: 1, 128>}, {pipeline_mode = #tpu.pipeline_mode<synchronous>, transform_indices = @transform_3, window_bounds = array<i64: 640, 256>}, {pipeline_mode = #tpu.pipeline_mode<synchronous>, transform_indices = @transform_4, window_bounds = array<i64: 1, 256>}, {pipeline_mode = #tpu.pipeline_mode<synchronous>, transform_indices = @transform_5, window_bounds = array<i64: 768, 128>}, {pipeline_mode = #tpu.pipeline_mode<synchronous>, transform_indices = @transform_6, window_bounds = array<i64: 1, 128>}, {pipeline_mode = #tpu.pipeline_mode<synchronous>, transform_indices = @transform_7, window_bounds = array<i64: 512, 256>}, {pipeline_mode = #tpu.pipeline_mode<synchronous>, transform_indices = @transform_8, window_bounds = array<i64: 1, 256>}, {pipeline_mode = #tpu.pipeline_mode<synchronous>, transform_indices = @transform_9, window_bounds = array<i64: 256, 64>}, {pipeline_mode = #tpu.pipeline_mode<synchronous>, transform_indices = @transform_10, window_bounds = array<i64: 1, 64>}, {pipeline_mode = #tpu.pipeline_mode<synchronous>, transform_indices = @transform_11, window_bounds = array<i64: 64, 5>}, {pipeline_mode = #tpu.pipeline_mode<synchronous>, transform_indices = @transform_12, window_bounds = array<i64: 1, 5>}, {transform_indices = @transform_13, window_bounds = array<i64: 1, 2, 5>}]} {
    %c0 = arith.constant 0 : index
    %c0_0 = arith.constant 0 : index
    %0 = vector.load %arg1[%c0, %c0_0] : memref<48x42xbf16, #tpu.memory_space<vmem>>, vector<48x42xbf16>
    %c0_1 = arith.constant 0 : index
    %c0_2 = arith.constant 0 : index
    %1 = vector.load %arg2[%c0_1, %c0_2] : memref<42x128xbf16, #tpu.memory_space<vmem>>, vector<42x128xbf16>
    %cst = arith.constant dense<0.000000e+00> : vector<48x128xf32>
    %2 = tpu.matmul %0, %1, %cst {dimension_numbers = #tpu.dot_dimension_numbers<[1], [0], [0], [1], [0, 0, 1, 1], [], []>} : vector<48x42xbf16>, vector<42x128xbf16>, vector<48x128xf32> -> vector<48x128xf32>
    %c0_3 = arith.constant 0 : index
    %c0_4 = arith.constant 0 : index
    %3 = vector.load %arg3[%c0_3, %c0_4] : memref<1x128xf32, #tpu.memory_space<vmem>>, vector<1x128xf32>
    %4 = vector.broadcast %3 : vector<1x128xf32> to vector<48x128xf32>
    %5 = arith.addf %2, %4 : vector<48x128xf32>
    %cst_5 = arith.constant 0.000000e+00 : f32
    %6 = vector.broadcast %cst_5 : f32 to vector<48x128xf32>
    %7 = arith.maximumf %5, %6 : vector<48x128xf32>
    %8 = arith.truncf %7 : vector<48x128xf32> to vector<48x128xbf16>
    %9 = vector.extract_strided_slice %8 {offsets = [0, 0], sizes = [20, 128], strides = [1, 1]} : vector<48x128xbf16> to vector<20x128xbf16>
    %10 = vector.extract_strided_slice %8 {offsets = [24, 0], sizes = [20, 128], strides = [1, 1]} : vector<48x128xbf16> to vector<20x128xbf16>
    %11 = vector.extract_strided_slice %8 {offsets = [24, 0], sizes = [20, 128], strides = [1, 1]} : vector<48x128xbf16> to vector<20x128xbf16>
    %12 = vector.extract_strided_slice %8 {offsets = [2, 0], sizes = [20, 128], strides = [1, 1]} : vector<48x128xbf16> to vector<20x128xbf16>
    %13 = vector.extract_strided_slice %8 {offsets = [2, 0], sizes = [20, 128], strides = [1, 1]} : vector<48x128xbf16> to vector<20x128xbf16>
    %14 = vector.extract_strided_slice %8 {offsets = [26, 0], sizes = [20, 128], strides = [1, 1]} : vector<48x128xbf16> to vector<20x128xbf16>
    %15 = vector.extract_strided_slice %8 {offsets = [26, 0], sizes = [20, 128], strides = [1, 1]} : vector<48x128xbf16> to vector<20x128xbf16>
    %16 = vector.extract_strided_slice %8 {offsets = [4, 0], sizes = [20, 128], strides = [1, 1]} : vector<48x128xbf16> to vector<20x128xbf16>
    %17 = vector.extract_strided_slice %8 {offsets = [4, 0], sizes = [20, 128], strides = [1, 1]} : vector<48x128xbf16> to vector<20x128xbf16>
    %18 = vector.extract_strided_slice %8 {offsets = [28, 0], sizes = [20, 128], strides = [1, 1]} : vector<48x128xbf16> to vector<20x128xbf16>
    %19 = tpu.concatenate %9, %11, %13, %15, %17 in 1 : vector<20x128xbf16>, vector<20x128xbf16>, vector<20x128xbf16>, vector<20x128xbf16>, vector<20x128xbf16> -> vector<20x640xbf16>
    %20 = tpu.concatenate %10, %12, %14, %16, %18 in 1 : vector<20x128xbf16>, vector<20x128xbf16>, vector<20x128xbf16>, vector<20x128xbf16>, vector<20x128xbf16> -> vector<20x640xbf16>
    %c0_6 = arith.constant 0 : index
    %c0_7 = arith.constant 0 : index
    %21 = vector.load %arg4[%c0_6, %c0_7] : memref<640x256xbf16, #tpu.memory_space<vmem>>, vector<640x256xbf16>
    %cst_8 = arith.constant dense<0.000000e+00> : vector<20x256xf32>
    %22 = tpu.matmul %19, %21, %cst_8 {dimension_numbers = #tpu.dot_dimension_numbers<[1], [0], [0], [1], [0, 0, 1, 1], [], []>} : vector<20x640xbf16>, vector<640x256xbf16>, vector<20x256xf32> -> vector<20x256xf32>
    %c0_9 = arith.constant 0 : index
    %c0_10 = arith.constant 0 : index
    %23 = vector.load %arg4[%c0_9, %c0_10] : memref<640x256xbf16, #tpu.memory_space<vmem>>, vector<640x256xbf16>
    %cst_11 = arith.constant dense<0.000000e+00> : vector<20x256xf32>
    %24 = tpu.matmul %20, %23, %cst_11 {dimension_numbers = #tpu.dot_dimension_numbers<[1], [0], [0], [1], [0, 0, 1, 1], [], []>} : vector<20x640xbf16>, vector<640x256xbf16>, vector<20x256xf32> -> vector<20x256xf32>
    %25 = arith.maximumf %22, %24 : vector<20x256xf32>
    %c0_12 = arith.constant 0 : index
    %c0_13 = arith.constant 0 : index
    %26 = vector.load %arg5[%c0_12, %c0_13] : memref<1x256xf32, #tpu.memory_space<vmem>>, vector<1x256xf32>
    %27 = vector.broadcast %26 : vector<1x256xf32> to vector<20x256xf32>
    %28 = arith.addf %25, %27 : vector<20x256xf32>
    %cst_14 = arith.constant 0.000000e+00 : f32
    %29 = vector.broadcast %cst_14 : f32 to vector<20x256xf32>
    %30 = arith.maximumf %28, %29 : vector<20x256xf32>
    %31 = arith.truncf %30 : vector<20x256xf32> to vector<20x256xbf16>
    %32 = vector.extract_strided_slice %31 {offsets = [0, 0], sizes = [16, 256], strides = [1, 1]} : vector<20x256xbf16> to vector<16x256xbf16>
    %33 = vector.extract_strided_slice %31 {offsets = [2, 0], sizes = [16, 256], strides = [1, 1]} : vector<20x256xbf16> to vector<16x256xbf16>
    %34 = vector.extract_strided_slice %31 {offsets = [4, 0], sizes = [16, 256], strides = [1, 1]} : vector<20x256xbf16> to vector<16x256xbf16>
    %35 = tpu.concatenate %32, %33, %34 in 1 : vector<16x256xbf16>, vector<16x256xbf16>, vector<16x256xbf16> -> vector<16x768xbf16>
    %c0_15 = arith.constant 0 : index
    %c0_16 = arith.constant 0 : index
    %36 = vector.load %arg6[%c0_15, %c0_16] : memref<768x128xbf16, #tpu.memory_space<vmem>>, vector<768x128xbf16>
    %cst_17 = arith.constant dense<0.000000e+00> : vector<16x128xf32>
    %37 = tpu.matmul %35, %36, %cst_17 {dimension_numbers = #tpu.dot_dimension_numbers<[1], [0], [0], [1], [0, 0, 1, 1], [], []>} : vector<16x768xbf16>, vector<768x128xbf16>, vector<16x128xf32> -> vector<16x128xf32>
    %38 = vector.extract_strided_slice %37 {offsets = [0, 0], sizes = [2, 128], strides = [1, 1]} : vector<16x128xf32> to vector<2x128xf32>
    %39 = vector.extract_strided_slice %37 {offsets = [2, 0], sizes = [2, 128], strides = [1, 1]} : vector<16x128xf32> to vector<2x128xf32>
    %40 = arith.maximumf %38, %39 : vector<2x128xf32>
    %c0_18 = arith.constant 0 : index
    %c0_19 = arith.constant 0 : index
    %41 = vector.load %arg7[%c0_18, %c0_19] : memref<1x128xf32, #tpu.memory_space<vmem>>, vector<1x128xf32>
    %42 = vector.broadcast %41 : vector<1x128xf32> to vector<2x128xf32>
    %43 = arith.addf %40, %42 : vector<2x128xf32>
    %cst_20 = arith.constant 0.000000e+00 : f32
    %44 = vector.broadcast %cst_20 : f32 to vector<2x128xf32>
    %45 = arith.maximumf %43, %44 : vector<2x128xf32>
    %46 = vector.extract_strided_slice %37 {offsets = [4, 0], sizes = [2, 128], strides = [1, 1]} : vector<16x128xf32> to vector<2x128xf32>
    %47 = vector.extract_strided_slice %37 {offsets = [6, 0], sizes = [2, 128], strides = [1, 1]} : vector<16x128xf32> to vector<2x128xf32>
    %48 = arith.maximumf %46, %47 : vector<2x128xf32>
    %c0_21 = arith.constant 0 : index
    %c0_22 = arith.constant 0 : index
    %49 = vector.load %arg7[%c0_21, %c0_22] : memref<1x128xf32, #tpu.memory_space<vmem>>, vector<1x128xf32>
    %50 = vector.broadcast %49 : vector<1x128xf32> to vector<2x128xf32>
    %51 = arith.addf %48, %50 : vector<2x128xf32>
    %cst_23 = arith.constant 0.000000e+00 : f32
    %52 = vector.broadcast %cst_23 : f32 to vector<2x128xf32>
    %53 = arith.maximumf %51, %52 : vector<2x128xf32>
    %54 = vector.extract_strided_slice %37 {offsets = [8, 0], sizes = [2, 128], strides = [1, 1]} : vector<16x128xf32> to vector<2x128xf32>
    %55 = vector.extract_strided_slice %37 {offsets = [10, 0], sizes = [2, 128], strides = [1, 1]} : vector<16x128xf32> to vector<2x128xf32>
    %56 = arith.maximumf %54, %55 : vector<2x128xf32>
    %c0_24 = arith.constant 0 : index
    %c0_25 = arith.constant 0 : index
    %57 = vector.load %arg7[%c0_24, %c0_25] : memref<1x128xf32, #tpu.memory_space<vmem>>, vector<1x128xf32>
    %58 = vector.broadcast %57 : vector<1x128xf32> to vector<2x128xf32>
    %59 = arith.addf %56, %58 : vector<2x128xf32>
    %cst_26 = arith.constant 0.000000e+00 : f32
    %60 = vector.broadcast %cst_26 : f32 to vector<2x128xf32>
    %61 = arith.maximumf %59, %60 : vector<2x128xf32>
    %62 = vector.extract_strided_slice %37 {offsets = [12, 0], sizes = [2, 128], strides = [1, 1]} : vector<16x128xf32> to vector<2x128xf32>
    %63 = vector.extract_strided_slice %37 {offsets = [14, 0], sizes = [2, 128], strides = [1, 1]} : vector<16x128xf32> to vector<2x128xf32>
    %64 = arith.maximumf %62, %63 : vector<2x128xf32>
    %c0_27 = arith.constant 0 : index
    %c0_28 = arith.constant 0 : index
    %65 = vector.load %arg7[%c0_27, %c0_28] : memref<1x128xf32, #tpu.memory_space<vmem>>, vector<1x128xf32>
    %66 = vector.broadcast %65 : vector<1x128xf32> to vector<2x128xf32>
    %67 = arith.addf %64, %66 : vector<2x128xf32>
    %cst_29 = arith.constant 0.000000e+00 : f32
    %68 = vector.broadcast %cst_29 : f32 to vector<2x128xf32>
    %69 = arith.maximumf %67, %68 : vector<2x128xf32>
    %70 = tpu.concatenate %45, %53, %61, %69 in 1 : vector<2x128xf32>, vector<2x128xf32>, vector<2x128xf32>, vector<2x128xf32> -> vector<2x512xf32>
    %71 = arith.truncf %70 : vector<2x512xf32> to vector<2x512xbf16>
    %c0_30 = arith.constant 0 : index
    %c0_31 = arith.constant 0 : index
    %72 = vector.load %arg8[%c0_30, %c0_31] : memref<512x256xbf16, #tpu.memory_space<vmem>>, vector<512x256xbf16>
    %cst_32 = arith.constant dense<0.000000e+00> : vector<2x256xf32>
    %73 = tpu.matmul %71, %72, %cst_32 {dimension_numbers = #tpu.dot_dimension_numbers<[1], [0], [0], [1], [0, 0, 1, 1], [], []>} : vector<2x512xbf16>, vector<512x256xbf16>, vector<2x256xf32> -> vector<2x256xf32>
    %c0_33 = arith.constant 0 : index
    %c0_34 = arith.constant 0 : index
    %74 = vector.load %arg9[%c0_33, %c0_34] : memref<1x256xf32, #tpu.memory_space<vmem>>, vector<1x256xf32>
    %75 = vector.broadcast %74 : vector<1x256xf32> to vector<2x256xf32>
    %76 = arith.addf %73, %75 : vector<2x256xf32>
    %cst_35 = arith.constant 0.000000e+00 : f32
    %77 = vector.broadcast %cst_35 : f32 to vector<2x256xf32>
    %78 = arith.maximumf %76, %77 : vector<2x256xf32>
    %79 = arith.truncf %78 : vector<2x256xf32> to vector<2x256xbf16>
    %c0_36 = arith.constant 0 : index
    %c0_37 = arith.constant 0 : index
    %80 = vector.load %arg10[%c0_36, %c0_37] : memref<256x64xbf16, #tpu.memory_space<vmem>>, vector<256x64xbf16>
    %cst_38 = arith.constant dense<0.000000e+00> : vector<2x64xf32>
    %81 = tpu.matmul %79, %80, %cst_38 {dimension_numbers = #tpu.dot_dimension_numbers<[1], [0], [0], [1], [0, 0, 1, 1], [], []>} : vector<2x256xbf16>, vector<256x64xbf16>, vector<2x64xf32> -> vector<2x64xf32>
    %c0_39 = arith.constant 0 : index
    %c0_40 = arith.constant 0 : index
    %82 = vector.load %arg11[%c0_39, %c0_40] : memref<1x64xf32, #tpu.memory_space<vmem>>, vector<1x64xf32>
    %83 = vector.broadcast %82 : vector<1x64xf32> to vector<2x64xf32>
    %84 = arith.addf %81, %83 : vector<2x64xf32>
    %cst_41 = arith.constant 0.000000e+00 : f32
    %85 = vector.broadcast %cst_41 : f32 to vector<2x64xf32>
    %86 = arith.maximumf %84, %85 : vector<2x64xf32>
    %87 = arith.truncf %86 : vector<2x64xf32> to vector<2x64xbf16>
    %c0_42 = arith.constant 0 : index
    %c0_43 = arith.constant 0 : index
    %88 = vector.load %arg12[%c0_42, %c0_43] : memref<64x5xbf16, #tpu.memory_space<vmem>>, vector<64x5xbf16>
    %cst_44 = arith.constant dense<0.000000e+00> : vector<2x5xf32>
    %89 = tpu.matmul %87, %88, %cst_44 {dimension_numbers = #tpu.dot_dimension_numbers<[1], [0], [0], [1], [0, 0, 1, 1], [], []>} : vector<2x64xbf16>, vector<64x5xbf16>, vector<2x5xf32> -> vector<2x5xf32>
    %c0_45 = arith.constant 0 : index
    %c0_46 = arith.constant 0 : index
    %90 = vector.load %arg13[%c0_45, %c0_46] : memref<1x5xf32, #tpu.memory_space<vmem>>, vector<1x5xf32>
    %91 = vector.broadcast %90 : vector<1x5xf32> to vector<2x5xf32>
    %92 = arith.addf %89, %91 : vector<2x5xf32>
    %c0_47 = arith.constant 0 : index
    %c0_48 = arith.constant 0 : index
    %c0_49 = arith.constant 0 : index
    %93 = vector.load %arg14[%c0_47, %c0_48, %c0_49] : memref<1x2x5xf32, #tpu.memory_space<vmem>>, vector<1x2x5xf32>
    %94 = vector.shape_cast %93 : vector<1x2x5xf32> to vector<2x5xf32>
    %95 = vector.shape_cast %92 : vector<2x5xf32> to vector<1x2x5xf32>
    tpu.vector_store %arg14[%c0_47, %c0_48, %c0_49], %95 {strides = array<i32>} : memref<1x2x5xf32, #tpu.memory_space<vmem>>, vector<1x2x5xf32>,
    return
  }
  func.func @transform_0(%arg0: i32) -> (i32, i32) {
    %c0_i32 = arith.constant 0 : i32
    %c0_i32_0 = arith.constant 0 : i32
    return %arg0, %c0_i32 : i32, i32
  }
  func.func @transform_1(%arg0: i32) -> (i32, i32) {
    %c0_i32 = arith.constant 0 : i32
    %c0_i32_0 = arith.constant 0 : i32
    %c0_i32_1 = arith.constant 0 : i32
    return %c0_i32, %c0_i32_0 : i32, i32
  }
  func.func @transform_2(%arg0: i32) -> (i32, i32) {
    %c0_i32 = arith.constant 0 : i32
    %c0_i32_0 = arith.constant 0 : i32
    %c0_i32_1 = arith.constant 0 : i32
    return %c0_i32, %c0_i32_0 : i32, i32
  }
  func.func @transform_3(%arg0: i32) -> (i32, i32) {
    %c0_i32 = arith.constant 0 : i32
    %c0_i32_0 = arith.constant 0 : i32
    %c0_i32_1 = arith.constant 0 : i32
    return %c0_i32, %c0_i32_0 : i32, i32
  }
  func.func @transform_4(%arg0: i32) -> (i32, i32) {
    %c0_i32 = arith.constant 0 : i32
    %c0_i32_0 = arith.constant 0 : i32
    %c0_i32_1 = arith.constant 0 : i32
    return %c0_i32, %c0_i32_0 : i32, i32
  }
  func.func @transform_5(%arg0: i32) -> (i32, i32) {
    %c0_i32 = arith.constant 0 : i32
    %c0_i32_0 = arith.constant 0 : i32
    %c0_i32_1 = arith.constant 0 : i32
    return %c0_i32, %c0_i32_0 : i32, i32
  }
  func.func @transform_6(%arg0: i32) -> (i32, i32) {
    %c0_i32 = arith.constant 0 : i32
    %c0_i32_0 = arith.constant 0 : i32
    %c0_i32_1 = arith.constant 0 : i32
    return %c0_i32, %c0_i32_0 : i32, i32
  }
  func.func @transform_7(%arg0: i32) -> (i32, i32) {
    %c0_i32 = arith.constant 0 : i32
    %c0_i32_0 = arith.constant 0 : i32
    %c0_i32_1 = arith.constant 0 : i32
    return %c0_i32, %c0_i32_0 : i32, i32
  }
  func.func @transform_8(%arg0: i32) -> (i32, i32) {
    %c0_i32 = arith.constant 0 : i32
    %c0_i32_0 = arith.constant 0 : i32
    %c0_i32_1 = arith.constant 0 : i32
    return %c0_i32, %c0_i32_0 : i32, i32
  }
  func.func @transform_9(%arg0: i32) -> (i32, i32) {
    %c0_i32 = arith.constant 0 : i32
    %c0_i32_0 = arith.constant 0 : i32
    %c0_i32_1 = arith.constant 0 : i32
    return %c0_i32, %c0_i32_0 : i32, i32
  }
  func.func @transform_10(%arg0: i32) -> (i32, i32) {
    %c0_i32 = arith.constant 0 : i32
    %c0_i32_0 = arith.constant 0 : i32
    %c0_i32_1 = arith.constant 0 : i32
    return %c0_i32, %c0_i32_0 : i32, i32
  }
  func.func @transform_11(%arg0: i32) -> (i32, i32) {
    %c0_i32 = arith.constant 0 : i32
    %c0_i32_0 = arith.constant 0 : i32
    %c0_i32_1 = arith.constant 0 : i32
    return %c0_i32, %c0_i32_0 : i32, i32
  }
  func.func @transform_12(%arg0: i32) -> (i32, i32) {
    %c0_i32 = arith.constant 0 : i32
    %c0_i32_0 = arith.constant 0 : i32
    %c0_i32_1 = arith.constant 0 : i32
    return %c0_i32, %c0_i32_0 : i32, i32
  }
  func.func @transform_13(%arg0: i32) -> (i32, i32, i32) {
    %c0_i32 = arith.constant 0 : i32
    %c0_i32_0 = arith.constant 0 : i32
    %c0_i32_1 = arith.constant 0 : i32
    return %arg0, %c0_i32, %c0_i32_0 : i32, i32, i32
  }
}

</mosaic_0001>

<llo_original>
// kernel: tpu_custom_call.1
$region0: #{tpu_custom_call.1}
  #allocation0 [shape = 'u32[]', space=smem, size = 0x4, offset = 0x4, fixed_abs, tag = 'smem constant byte address 0x4 - core index']
  #allocation1 [shape = 'u32[72,128]{1,0:T(1,128)}', space=vmem, size = 0x9000, scoped, tag = 'internal scratch']
  %s0 = inlined_call_operand.vmem [shape: bf16[48,42], index: 0, kind: input, shape index: {}]
  %s1 = inlined_call_operand.vmem [shape: bf16[42,128], index: 1, kind: input, shape index: {}]
  %s2 = inlined_call_operand.vmem [shape: f32[1,128], index: 2, kind: input, shape index: {}]
  %s3 = inlined_call_operand.hbm [shape: bf16[640,256], index: 3, kind: input, shape index: {}]
  %s4 = inlined_call_operand.vmem [shape: f32[1,256], index: 4, kind: input, shape index: {}]
  %s5 = inlined_call_operand.hbm [shape: bf16[768,128], index: 5, kind: input, shape index: {}]
  %s6 = inlined_call_operand.vmem [shape: f32[1,128], index: 6, kind: input, shape index: {}]
  %s7 = inlined_call_operand.hbm [shape: bf16[512,256], index: 7, kind: input, shape index: {}]
  %s8 = inlined_call_operand.vmem [shape: f32[1,256], index: 8, kind: input, shape index: {}]
  %s9 = inlined_call_operand.vmem [shape: bf16[256,64], index: 9, kind: input, shape index: {}]
  %s10 = inlined_call_operand.vmem [shape: f32[1,64], index: 10, kind: input, shape index: {}]
  %s11 = inlined_call_operand.vmem [shape: bf16[64,5], index: 11, kind: input, shape index: {}]
  %s12 = inlined_call_operand.vmem [shape: f32[1,5], index: 12, kind: input, shape index: {}]
  %s13 = inlined_call_operand.hbm [shape: f32[1,2,5], index: 13, kind: output, shape index: {}]
  %s14 = sld [smem:[#allocation0]]
  $region74: #{tpu_custom_call.1} parent=0
    _
  %s16 = ssub.s32 1, %s14
  %s17 = scalar_select 0, %s16, %s14
  $region1: #{tpu_custom_call.1} parent=0
    #allocation2 [shape = 'u8[327680]{0}', space=vmem, size = 0x50000, scoped, tag = 'input window, operand 3, single buffered']
    #allocation3 [shape = 's32[1]{0}', space=sflag, size = 0x4, scoped, tag = 'scoped memory for tpu_custom_call.1']
    #allocation4 [shape = 's32[1]{0}', space=sflag, size = 0x4, scoped, tag = 'scoped memory for tpu_custom_call.1']
    #allocation5 [shape = 'u8[196608]{0}', space=vmem, size = 0x30000, scoped, tag = 'input window, operand 5, single buffered']
    #allocation6 [shape = 's32[1]{0}', space=sflag, size = 0x4, scoped, tag = 'scoped memory for tpu_custom_call.1']
    #allocation7 [shape = 'u8[262144]{0}', space=vmem, size = 0x40000, scoped, tag = 'input window, operand 7, single buffered']
    #allocation8 [shape = 'u8[1024]{0}', space=vmem, size = 0x400, scoped, tag = 'output window, operand 0, single buffered']
    %18 = vsyncpa [#allocation3], 0
    %19 = vsyncpa [#allocation6], 0
    %20 = vsyncpa [#allocation4], 0
    // Predicated region
    $region2: #{tpu_custom_call.1} parent=1 // pred_check
      _
    $region3: #{tpu_custom_call.1} parent=1 // pred_check_branch
      %22 = sbr.rel (0) target = $region5
    $region4: #{tpu_custom_call.1} parent=1 // pred_region
      _
    $region5: #{tpu_custom_call.1} parent=1 // pred_fallthru
      _
    // Predicated region
    $region6: #{tpu_custom_call.1} parent=1 // pred_check
      _
    $region7: #{tpu_custom_call.1} parent=1 // pred_check_branch
      %24 = sbr.rel (0) target = $region9
    $region8: #{tpu_custom_call.1} parent=1 // pred_region
      _
    $region9: #{tpu_custom_call.1} parent=1 // pred_fallthru
      _
    // Predicated region
    $region10: #{tpu_custom_call.1} parent=1 // pred_check
      _
    $region11: #{tpu_custom_call.1} parent=1 // pred_check_branch
      %26 = sbr.rel (0) target = $region13
    $region12: #{tpu_custom_call.1} parent=1 // pred_region
      _
    $region13: #{tpu_custom_call.1} parent=1 // pred_fallthru
      _
    // Predicated region
    $region14: #{tpu_custom_call.1} parent=1 // pred_check
      _
    $region15: #{tpu_custom_call.1} parent=1 // pred_check_branch
      %28 = sbr.rel (0) target = $region17
    $region16: #{tpu_custom_call.1} parent=1 // pred_region
      %30 = vsyncadd [#allocation3], 0
      %s31 = sshll.u32 %s3, 4
      %s32 = int_to_ptr.hbm [resolvable:$true] %s31
      %s33 = sshll.u32 [#allocation2], 4
      %s34 = int_to_ptr.vmem [resolvable:$true] %s33
      %39 = dma.hbm_to_vmem [thread:$0]  %s32, 10240, %s34, [#allocation3], 128, 128, 8
    $region17: #{tpu_custom_call.1} parent=1 // pred_fallthru
      _
    // Predicated region
    $region18: #{tpu_custom_call.1} parent=1 // pred_check
      _
    $region19: #{tpu_custom_call.1} parent=1 // pred_check_branch
      %41 = sbr.rel (0) target = $region21
    $region20: #{tpu_custom_call.1} parent=1 // pred_region
      _
    $region21: #{tpu_custom_call.1} parent=1 // pred_fallthru
      _
    // Predicated region
    $region22: #{tpu_custom_call.1} parent=1 // pred_check
      _
    $region23: #{tpu_custom_call.1} parent=1 // pred_check_branch
      %43 = sbr.rel (0) target = $region25
    $region24: #{tpu_custom_call.1} parent=1 // pred_region
      %45 = vsyncadd [#allocation6], 0
      %s46 = sshll.u32 %s5, 4
      %s47 = int_to_ptr.hbm [resolvable:$true] %s46
      %s48 = sshll.u32 [#allocation5], 4
      %s49 = int_to_ptr.vmem [resolvable:$true] %s48
      %54 = dma.hbm_to_vmem [thread:$0]  %s47, 6144, %s49, [#allocation6], 64, 64, 4
    $region25: #{tpu_custom_call.1} parent=1 // pred_fallthru
      _
    // Predicated region
    $region26: #{tpu_custom_call.1} parent=1 // pred_check
      _
    $region27: #{tpu_custom_call.1} parent=1 // pred_check_branch
      %56 = sbr.rel (0) target = $region29
    $region28: #{tpu_custom_call.1} parent=1 // pred_region
      _
    $region29: #{tpu_custom_call.1} parent=1 // pred_fallthru
      _
    // Predicated region
    $region30: #{tpu_custom_call.1} parent=1 // pred_check
      _
    $region31: #{tpu_custom_call.1} parent=1 // pred_check_branch
      %58 = sbr.rel (0) target = $region33
    $region32: #{tpu_custom_call.1} parent=1 // pred_region
      %60 = vsyncadd [#allocation6], 0
      %s61 = sshll.u32 %s7, 4
      %s62 = int_to_ptr.hbm [resolvable:$true] %s61
      %s63 = sshll.u32 [#allocation7], 4
      %s64 = int_to_ptr.vmem [resolvable:$true] %s63
      %69 = dma.hbm_to_vmem [thread:$0]  %s62, 8192, %s64, [#allocation6], 128, 128, 8
    $region33: #{tpu_custom_call.1} parent=1 // pred_fallthru
      _
    // Predicated region
    $region34: #{tpu_custom_call.1} parent=1 // pred_check
      _
    $region35: #{tpu_custom_call.1} parent=1 // pred_check_branch
      %71 = sbr.rel (0) target = $region37
    $region36: #{tpu_custom_call.1} parent=1 // pred_region
      _
    $region37: #{tpu_custom_call.1} parent=1 // pred_fallthru
      _
    // Predicated region
    $region38: #{tpu_custom_call.1} parent=1 // pred_check
      _
    $region39: #{tpu_custom_call.1} parent=1 // pred_check_branch
      %73 = sbr.rel (0) target = $region41
    $region40: #{tpu_custom_call.1} parent=1 // pred_region
      _
    $region41: #{tpu_custom_call.1} parent=1 // pred_fallthru
      _
    // Predicated region
    $region42: #{tpu_custom_call.1} parent=1 // pred_check
      _
    $region43: #{tpu_custom_call.1} parent=1 // pred_check_branch
      %75 = sbr.rel (0) target = $region45
    $region44: #{tpu_custom_call.1} parent=1 // pred_region
      _
    $region45: #{tpu_custom_call.1} parent=1 // pred_fallthru
      _
    // Predicated region
    $region46: #{tpu_custom_call.1} parent=1 // pred_check
      _
    $region47: #{tpu_custom_call.1} parent=1 // pred_check_branch
      %77 = sbr.rel (0) target = $region49
    $region48: #{tpu_custom_call.1} parent=1 // pred_region
      _
    $region49: #{tpu_custom_call.1} parent=1 // pred_fallthru
      _
    // Predicated region
    $region50: #{tpu_custom_call.1} parent=1 // pred_check
      _
    $region51: #{tpu_custom_call.1} parent=1 // pred_check_branch
      %79 = sbr.rel (0) target = $region53
    $region52: #{tpu_custom_call.1} parent=1 // pred_region
      _
    $region53: #{tpu_custom_call.1} parent=1 // pred_fallthru
      _
    // Predicated region
    $region54: #{tpu_custom_call.1} parent=1 // pred_check
      _
    $region55: #{tpu_custom_call.1} parent=1 // pred_check_branch
      %81 = sbr.rel (0) target = $region57
    $region56: #{tpu_custom_call.1} parent=1 // pred_region
      %83 = dma.done [#allocation3], 10240
    $region57: #{tpu_custom_call.1} parent=1 // pred_fallthru
      _
    // Predicated region
    $region58: #{tpu_custom_call.1} parent=1 // pred_check
      _
    $region59: #{tpu_custom_call.1} parent=1 // pred_check_branch
      %85 = sbr.rel (0) target = $region61
    $region60: #{tpu_custom_call.1} parent=1 // pred_region
      %87 = dma.done [#allocation6], 6144
    $region61: #{tpu_custom_call.1} parent=1 // pred_fallthru
      _
    // Predicated region
    $region62: #{tpu_custom_call.1} parent=1 // pred_check
      _
    $region63: #{tpu_custom_call.1} parent=1 // pred_check_branch
      %89 = sbr.rel (0) target = $region65
    $region64: #{tpu_custom_call.1} parent=1 // pred_region
      %91 = dma.done [#allocation6], 8192
    $region65: #{tpu_custom_call.1} parent=1 // pred_fallthru
      _
    %v93 = vld [vmem:[%s0] sm:$0xf]
    %v94 = vld [vmem:[%s0 + $0x4] sm:$0xf]
    %v95 = vld [vmem:[%s0 + $0x8] sm:$0xf]
    %v96 = vld [vmem:[%s0 + $0xc] sm:$0xf]
    %v97 = vld [vmem:[%s0 + $0x10] sm:$0xf]
    %v98 = vld [vmem:[%s0 + $0x14] sm:$0xf]
    %v99 = vld [vmem:[%s1] sm:$0xf]
    %v100 = vld [vmem:[%s1 + $0x4] sm:$0xf]
    %v101 = vld [vmem:[%s1 + $0x8] sm:$0xf]
    %v102 = vld [vmem:[%s1 + $0xc] sm:$0xf]
    %v103 = vld [vmem:[%s1 + $0x10] sm:$0xf]
    %v104 = vld [vmem:[%s1 + $0x14] sm:$0x1]
    %v105 = vld [vmem:[%s2] sm:$0x1]
    %v107 = vperm.slane %v105, 0
    %v115 = vunpack.c.l.b16 %v93
    %v116 = vunpack.c.l.b16 %v94
    %v117 = vunpack.c.l.b16 %v95
    %v118 = vunpack.c.l.b16 %v96
    %v119 = vunpack.c.l.b16 %v97
    %v120 = vunpack.c.l.b16 %v98
    %v121 = vpack.c.b16 %v116, %v115
    %v122 = vpack.c.b16 %v118, %v117
    %v123 = vpack.c.b16 %v120, %v119
    %v130 = vunpack.c.l.b16 %v99
    %v131 = vunpack.c.l.b16 %v100
    %v132 = vunpack.c.l.b16 %v101
    %v133 = vunpack.c.l.b16 %v102
    %v134 = vunpack.c.l.b16 %v103
    %v135 = vunpack.c.l.b16 %v104
    %v136 = vpack.c.b16 %v131, %v130
    %v137 = vpack.c.b16 %v133, %v132
    %v138 = vpack.c.b16 %v135, %v134
    %vm141 = vcmask 343040
    %v143 = vsel %vm141, %v121, 0
    %v146 = vsel %vm141, %v122, 0
    %v149 = vsel %vm141, %v123, 0
    %vm151 = vcmask 1044480
    %v153 = vsel %vm151, %v138, 0
    %155 = vmatpush.bf16.msra.mxu0 0
    %156 = vmatpush.bf16.msra.mxu0 0
    %157 = vmatpush.bf16.msra.mxu0 0
    %158 = vmatpush.bf16.msra.mxu0 0
    %159 = vmatpush.bf16.msra.mxu0 0
    %160 = vmatpush.bf16.msra.mxu0 %v153
    %161 = vmatpush.bf16.msra.mxu0 %v137
    %162 = vmatpush.bf16.msra.mxu0 %v136
    %163 = vmatmul.bf16.gmra.mxu0 %v143
    %v164 = vpop.f32.mrf.mxu0
    %v165 = vadd.f32 %v107, %v164
    %v166 = vpop.f32.mrf.mxu0
    %v167 = vadd.f32 %v107, %v166
    %168 = vmatmul.bf16.gmra.mxu0 %v146
    %v169 = vpop.f32.mrf.mxu0
    %v170 = vadd.f32 %v107, %v169
    %v171 = vpop.f32.mrf.mxu0
    %v172 = vadd.f32 %v107, %v171
    %173 = vmatmul.bf16.gmra.mxu0 %v149
    %v174 = vpop.f32.mrf.mxu0
    %v175 = vadd.f32 %v107, %v174
    %v176 = vpop.f32.mrf.mxu0
    %v177 = vadd.f32 %v107, %v176
    %178 = vdwg.mxu0
    %v179 = vmax.f32 %v165, 0.0
    %v180 = vmax.f32 %v167, 0.0
    %v181 = vmax.f32 %v170, 0.0
    %v182 = vmax.f32 %v172, 0.0
    %v183 = vmax.f32 %v175, 0.0
    %v184 = vmax.f32 %v177, 0.0
    %v185 = vpack.c.bf16 %v179, %v179
    %v186 = vpack.c.bf16 %v180, %v180
    %v187 = vpack.c.bf16 %v181, %v181
    %v188 = vpack.c.bf16 %v182, %v182
    %v189 = vpack.c.bf16 %v183, %v183
    %v190 = vpack.c.bf16 %v184, %v184
    %v194 = vunpack.c.l.b16 %v185
    %v195 = vunpack.c.l.b16 %v186
    %v196 = vunpack.c.l.b16 %v187
    %v197 = vpack.c.b16 %v195, %v194
    %v198 = vpack.c.b16 %v196, %v196
    %v204 = vunpack.c.l.b16 %v188
    %v205 = vunpack.c.l.b16 %v189
    %v206 = vunpack.c.l.b16 %v190
    %v207 = vpack.c.b16 %v205, %v204
    %v208 = vpack.c.b16 %v206, %v206
    %vm211 = vcmask 1046528
    %v212 = vrot.slane %v197, 1
    %v213 = vrot.slane %v198, 1
    %v214 = vsel %vm211, %v212, %v213
    %v217 = vrot.slane %v207, 1
    %v218 = vrot.slane %v208, 1
    %v219 = vsel %vm211, %v217, %v218
    %vm222 = vcmask 1045504
    %v223 = vrot.slane %v197, 2
    %v224 = vrot.slane %v198, 2
    %v225 = vsel %vm222, %v223, %v224
    %v228 = vrot.slane %v207, 2
    %v229 = vrot.slane %v208, 2
    %v230 = vsel %vm222, %v228, %v229
    %v233 = vld [vmem:[#allocation2] sm:$0xff]
    %v234 = vld [vmem:[#allocation2 + $0x8] sm:$0xff]
    %v235 = vld [vmem:[#allocation2 + $0x10] sm:$0xff]
    %v236 = vld [vmem:[#allocation2 + $0x18] sm:$0xff]
    %v237 = vld [vmem:[#allocation2 + $0x20] sm:$0xff]
    %v238 = vld [vmem:[#allocation2 + $0x28] sm:$0xff]
    %v239 = vld [vmem:[#allocation2 + $0x30] sm:$0xff]
    %v240 = vld [vmem:[#allocation2 + $0x38] sm:$0xff]
    %v241 = vld [vmem:[#allocation2 + $0x40] sm:$0xff]
    %v242 = vld [vmem:[#allocation2 + $0x48] sm:$0xff]
    %v243 = vld [vmem:[#allocation2 + $0x50] sm:$0xff]
    %v244 = vld [vmem:[#allocation2 + $0x58] sm:$0xff]
    %v245 = vld [vmem:[#allocation2 + $0x60] sm:$0xff]
    %v246 = vld [vmem:[#allocation2 + $0x68] sm:$0xff]
    %v247 = vld [vmem:[#allocation2 + $0x70] sm:$0xff]
    %v248 = vld [vmem:[#allocation2 + $0x78] sm:$0xff]
    %v249 = vld [vmem:[#allocation2 + $0x80] sm:$0xff]
    %v250 = vld [vmem:[#allocation2 + $0x88] sm:$0xff]
    %v251 = vld [vmem:[#allocation2 + $0x90] sm:$0xff]
    %v252 = vld [vmem:[#allocation2 + $0x98] sm:$0xff]
    %v253 = vld [vmem:[#allocation2 + $0xa0] sm:$0xff]
    %v254 = vld [vmem:[#allocation2 + $0xa8] sm:$0xff]
    %v255 = vld [vmem:[#allocation2 + $0xb0] sm:$0xff]
    %v256 = vld [vmem:[#allocation2 + $0xb8] sm:$0xff]
    %v257 = vld [vmem:[#allocation2 + $0xc0] sm:$0xff]
    %v258 = vld [vmem:[#allocation2 + $0xc8] sm:$0xff]
    %v259 = vld [vmem:[#allocation2 + $0xd0] sm:$0xff]
    %v260 = vld [vmem:[#allocation2 + $0xd8] sm:$0xff]
    %v261 = vld [vmem:[#allocation2 + $0xe0] sm:$0xff]
    %v262 = vld [vmem:[#allocation2 + $0xe8] sm:$0xff]
    %v263 = vld [vmem:[#allocation2 + $0xf0] sm:$0xff]
    %v264 = vld [vmem:[#allocation2 + $0xf8] sm:$0xff]
    %v265 = vld [vmem:[#allocation2 + $0x100] sm:$0xff]
    %v266 = vld [vmem:[#allocation2 + $0x108] sm:$0xff]
    %v267 = vld [vmem:[#allocation2 + $0x110] sm:$0xff]
    %v268 = vld [vmem:[#allocation2 + $0x118] sm:$0xff]
    %v269 = vld [vmem:[#allocation2 + $0x120] sm:$0xff]
    %v270 = vld [vmem:[#allocation2 + $0x128] sm:$0xff]
    %v271 = vld [vmem:[#allocation2 + $0x130] sm:$0xff]
    %v272 = vld [vmem:[#allocation2 + $0x138] sm:$0xff]
    %v273 = vld [vmem:[#allocation2 + $0x140] sm:$0xff]
    %v274 = vld [vmem:[#allocation2 + $0x148] sm:$0xff]
    %v275 = vld [vmem:[#allocation2 + $0x150] sm:$0xff]
    %v276 = vld [vmem:[#allocation2 + $0x158] sm:$0xff]
    %v277 = vld [vmem:[#allocation2 + $0x160] sm:$0xff]
    %v278 = vld [vmem:[#allocation2 + $0x168] sm:$0xff]
    %v279 = vld [vmem:[#allocation2 + $0x170] sm:$0xff]
    %v280 = vld [vmem:[#allocation2 + $0x178] sm:$0xff]
    %v281 = vld [vmem:[#allocation2 + $0x180] sm:$0xff]
    %v282 = vld [vmem:[#allocation2 + $0x188] sm:$0xff]
    %v283 = vld [vmem:[#allocation2 + $0x190] sm:$0xff]
    %v284 = vld [vmem:[#allocation2 + $0x198] sm:$0xff]
    %v285 = vld [vmem:[#allocation2 + $0x1a0] sm:$0xff]
    %v286 = vld [vmem:[#allocation2 + $0x1a8] sm:$0xff]
    %v287 = vld [vmem:[#allocation2 + $0x1b0] sm:$0xff]
    %v288 = vld [vmem:[#allocation2 + $0x1b8] sm:$0xff]
    %v289 = vld [vmem:[#allocation2 + $0x1c0] sm:$0xff]
    %v290 = vld [vmem:[#allocation2 + $0x1c8] sm:$0xff]
    %v291 = vld [vmem:[#allocation2 + $0x1d0] sm:$0xff]
    %v292 = vld [vmem:[#allocation2 + $0x1d8] sm:$0xff]
    %v293 = vld [vmem:[#allocation2 + $0x1e0] sm:$0xff]
    %v294 = vld [vmem:[#allocation2 + $0x1e8] sm:$0xff]
    %v295 = vld [vmem:[#allocation2 + $0x1f0] sm:$0xff]
    %v296 = vld [vmem:[#allocation2 + $0x1f8] sm:$0xff]
    %v297 = vld [vmem:[#allocation2 + $0x200] sm:$0xff]
    %v298 = vld [vmem:[#allocation2 + $0x208] sm:$0xff]
    %v299 = vld [vmem:[#allocation2 + $0x210] sm:$0xff]
    %v300 = vld [vmem:[#allocation2 + $0x218] sm:$0xff]
    %v301 = vld [vmem:[#allocation2 + $0x220] sm:$0xff]
    %v302 = vld [vmem:[#allocation2 + $0x228] sm:$0xff]
    %v303 = vld [vmem:[#allocation2 + $0x230] sm:$0xff]
    %v304 = vld [vmem:[#allocation2 + $0x238] sm:$0xff]
    %v305 = vld [vmem:[#allocation2 + $0x240] sm:$0xff]
    %v306 = vld [vmem:[#allocation2 + $0x248] sm:$0xff]
    %v307 = vld [vmem:[#allocation2 + $0x250] sm:$0xff]
    %v308 = vld [vmem:[#allocation2 + $0x258] sm:$0xff]
    %v309 = vld [vmem:[#allocation2 + $0x260] sm:$0xff]
    %v310 = vld [vmem:[#allocation2 + $0x268] sm:$0xff]
    %v311 = vld [vmem:[#allocation2 + $0x270] sm:$0xff]
    %v312 = vld [vmem:[#allocation2 + $0x278] sm:$0xff]
    %v393 = vunpack.c.l.b16 %v233
    %v394 = vunpack.c.h.b16 %v233
    %v395 = vunpack.c.l.b16 %v234
    %v396 = vunpack.c.h.b16 %v234
    %v397 = vunpack.c.l.b16 %v235
    %v398 = vunpack.c.h.b16 %v235
    %v399 = vunpack.c.l.b16 %v236
    %v400 = vunpack.c.h.b16 %v236
    %v401 = vunpack.c.l.b16 %v237
    %v402 = vunpack.c.h.b16 %v237
    %v403 = vunpack.c.l.b16 %v238
    %v404 = vunpack.c.h.b16 %v238
    %v405 = vunpack.c.l.b16 %v239
    %v406 = vunpack.c.h.b16 %v239
    %v407 = vunpack.c.l.b16 %v240
    %v408 = vunpack.c.h.b16 %v240
    %v409 = vunpack.c.l.b16 %v241
    %v410 = vunpack.c.h.b16 %v241
    %v411 = vunpack.c.l.b16 %v242
    %v412 = vunpack.c.h.b16 %v242
    %v413 = vunpack.c.l.b16 %v243
    %v414 = vunpack.c.h.b16 %v243
    %v415 = vunpack.c.l.b16 %v244
    %v416 = vunpack.c.h.b16 %v244
    %v417 = vunpack.c.l.b16 %v245
    %v418 = vunpack.c.h.b16 %v245
    %v419 = vunpack.c.l.b16 %v246
    %v420 = vunpack.c.h.b16 %v246
    %v421 = vunpack.c.l.b16 %v247
    %v422 = vunpack.c.h.b16 %v247
    %v423 = vunpack.c.l.b16 %v248
    %v424 = vunpack.c.h.b16 %v248
    %v425 = vunpack.c.l.b16 %v249
    %v426 = vunpack.c.h.b16 %v249
    %v427 = vunpack.c.l.b16 %v250
    %v428 = vunpack.c.h.b16 %v250
    %v429 = vunpack.c.l.b16 %v251
    %v430 = vunpack.c.h.b16 %v251
    %v431 = vunpack.c.l.b16 %v252
    %v432 = vunpack.c.h.b16 %v252
    %v433 = vunpack.c.l.b16 %v253
    %v434 = vunpack.c.h.b16 %v253
    %v435 = vunpack.c.l.b16 %v254
    %v436 = vunpack.c.h.b16 %v254
    %v437 = vunpack.c.l.b16 %v255
    %v438 = vunpack.c.h.b16 %v255
    %v439 = vunpack.c.l.b16 %v256
    %v440 = vunpack.c.h.b16 %v256
    %v441 = vunpack.c.l.b16 %v257
    %v442 = vunpack.c.h.b16 %v257
    %v443 = vunpack.c.l.b16 %v258
    %v444 = vunpack.c.h.b16 %v258
    %v445 = vunpack.c.l.b16 %v259
    %v446 = vunpack.c.h.b16 %v259
    %v447 = vunpack.c.l.b16 %v260
    %v448 = vunpack.c.h.b16 %v260
    %v449 = vunpack.c.l.b16 %v261
    %v450 = vunpack.c.h.b16 %v261
    %v451 = vunpack.c.l.b16 %v262
    %v452 = vunpack.c.h.b16 %v262
    %v453 = vunpack.c.l.b16 %v263
    %v454 = vunpack.c.h.b16 %v263
    %v455 = vunpack.c.l.b16 %v264
    %v456 = vunpack.c.h.b16 %v264
    %v457 = vunpack.c.l.b16 %v265
    %v458 = vunpack.c.h.b16 %v265
    %v459 = vunpack.c.l.b16 %v266
    %v460 = vunpack.c.h.b16 %v266
    %v461 = vunpack.c.l.b16 %v267
    %v462 = vunpack.c.h.b16 %v267
    %v463 = vunpack.c.l.b16 %v268
    %v464 = vunpack.c.h.b16 %v268
    %v465 = vunpack.c.l.b16 %v269
    %v466 = vunpack.c.h.b16 %v269
    %v467 = vunpack.c.l.b16 %v270
    %v468 = vunpack.c.h.b16 %v270
    %v469 = vunpack.c.l.b16 %v271
    %v470 = vunpack.c.h.b16 %v271
    %v471 = vunpack.c.l.b16 %v272
    %v472 = vunpack.c.h.b16 %v272
    %v473 = vunpack.c.l.b16 %v273
    %v474 = vunpack.c.h.b16 %v273
    %v475 = vunpack.c.l.b16 %v274
    %v476 = vunpack.c.h.b16 %v274
    %v477 = vunpack.c.l.b16 %v275
    %v478 = vunpack.c.h.b16 %v275
    %v479 = vunpack.c.l.b16 %v276
    %v480 = vunpack.c.h.b16 %v276
    %v481 = vunpack.c.l.b16 %v277
    %v482 = vunpack.c.h.b16 %v277
    %v483 = vunpack.c.l.b16 %v278
    %v484 = vunpack.c.h.b16 %v278
    %v485 = vunpack.c.l.b16 %v279
    %v486 = vunpack.c.h.b16 %v279
    %v487 = vunpack.c.l.b16 %v280
    %v488 = vunpack.c.h.b16 %v280
    %v489 = vunpack.c.l.b16 %v281
    %v490 = vunpack.c.h.b16 %v281
    %v491 = vunpack.c.l.b16 %v282
    %v492 = vunpack.c.h.b16 %v282
    %v493 = vunpack.c.l.b16 %v283
    %v494 = vunpack.c.h.b16 %v283
    %v495 = vunpack.c.l.b16 %v284
    %v496 = vunpack.c.h.b16 %v284
    %v497 = vunpack.c.l.b16 %v285
    %v498 = vunpack.c.h.b16 %v285
    %v499 = vunpack.c.l.b16 %v286
    %v500 = vunpack.c.h.b16 %v286
    %v501 = vunpack.c.l.b16 %v287
    %v502 = vunpack.c.h.b16 %v287
    %v503 = vunpack.c.l.b16 %v288
    %v504 = vunpack.c.h.b16 %v288
    %v505 = vunpack.c.l.b16 %v289
    %v506 = vunpack.c.h.b16 %v289
    %v507 = vunpack.c.l.b16 %v290
    %v508 = vunpack.c.h.b16 %v290
    %v509 = vunpack.c.l.b16 %v291
    %v510 = vunpack.c.h.b16 %v291
    %v511 = vunpack.c.l.b16 %v292
    %v512 = vunpack.c.h.b16 %v292
    %v513 = vunpack.c.l.b16 %v293
    %v514 = vunpack.c.h.b16 %v293
    %v515 = vunpack.c.l.b16 %v294
    %v516 = vunpack.c.h.b16 %v294
    %v517 = vunpack.c.l.b16 %v295
    %v518 = vunpack.c.h.b16 %v295
    %v519 = vunpack.c.l.b16 %v296
    %v520 = vunpack.c.h.b16 %v296
    %v521 = vunpack.c.l.b16 %v297
    %v522 = vunpack.c.h.b16 %v297
    %v523 = vunpack.c.l.b16 %v298
    %v524 = vunpack.c.h.b16 %v298
    %v525 = vunpack.c.l.b16 %v299
    %v526 = vunpack.c.h.b16 %v299
    %v527 = vunpack.c.l.b16 %v300
    %v528 = vunpack.c.h.b16 %v300
    %v529 = vunpack.c.l.b16 %v301
    %v530 = vunpack.c.h.b16 %v301
    %v531 = vunpack.c.l.b16 %v302
    %v532 = vunpack.c.h.b16 %v302
    %v533 = vunpack.c.l.b16 %v303
    %v534 = vunpack.c.h.b16 %v303
    %v535 = vunpack.c.l.b16 %v304
    %v536 = vunpack.c.h.b16 %v304
    %v537 = vunpack.c.l.b16 %v305
    %v538 = vunpack.c.h.b16 %v305
    %v539 = vunpack.c.l.b16 %v306
    %v540 = vunpack.c.h.b16 %v306
    %v541 = vunpack.c.l.b16 %v307
    %v542 = vunpack.c.h.b16 %v307
    %v543 = vunpack.c.l.b16 %v308
    %v544 = vunpack.c.h.b16 %v308
    %v545 = vunpack.c.l.b16 %v309
    %v546 = vunpack.c.h.b16 %v309
    %v547 = vunpack.c.l.b16 %v310
    %v548 = vunpack.c.h.b16 %v310
    %v549 = vunpack.c.l.b16 %v311
    %v550 = vunpack.c.h.b16 %v311
    %v551 = vunpack.c.l.b16 %v312
    %v552 = vunpack.c.h.b16 %v312
    %v553 = vpack.c.b16 %v395, %v393
    %v554 = vpack.c.b16 %v396, %v394
    %v555 = vpack.c.b16 %v399, %v397
    %v556 = vpack.c.b16 %v400, %v398
    %v557 = vpack.c.b16 %v403, %v401
    %v558 = vpack.c.b16 %v404, %v402
    %v559 = vpack.c.b16 %v407, %v405
    %v560 = vpack.c.b16 %v408, %v406
    %v561 = vpack.c.b16 %v411, %v409
    %v562 = vpack.c.b16 %v412, %v410
    %v563 = vpack.c.b16 %v415, %v413
    %v564 = vpack.c.b16 %v416, %v414
    %v565 = vpack.c.b16 %v419, %v417
    %v566 = vpack.c.b16 %v420, %v418
    %v567 = vpack.c.b16 %v423, %v421
    %v568 = vpack.c.b16 %v424, %v422
    %v569 = vpack.c.b16 %v427, %v425
    %v570 = vpack.c.b16 %v428, %v426
    %v571 = vpack.c.b16 %v431, %v429
    %v572 = vpack.c.b16 %v432, %v430
    %v573 = vpack.c.b16 %v435, %v433
    %v574 = vpack.c.b16 %v436, %v434
    %v575 = vpack.c.b16 %v439, %v437
    %v576 = vpack.c.b16 %v440, %v438
    %v577 = vpack.c.b16 %v443, %v441
    %v578 = vpack.c.b16 %v444, %v442
    %v579 = vpack.c.b16 %v447, %v445
    %v580 = vpack.c.b16 %v448, %v446
    %v581 = vpack.c.b16 %v451, %v449
    %v582 = vpack.c.b16 %v452, %v450
    %v583 = vpack.c.b16 %v455, %v453
    %v584 = vpack.c.b16 %v456, %v454
    %v585 = vpack.c.b16 %v459, %v457
    %v586 = vpack.c.b16 %v460, %v458
    %v587 = vpack.c.b16 %v463, %v461
    %v588 = vpack.c.b16 %v464, %v462
    %v589 = vpack.c.b16 %v467, %v465
    %v590 = vpack.c.b16 %v468, %v466
    %v591 = vpack.c.b16 %v471, %v469
    %v592 = vpack.c.b16 %v472, %v470
    %v593 = vpack.c.b16 %v475, %v473
    %v594 = vpack.c.b16 %v476, %v474
    %v595 = vpack.c.b16 %v479, %v477
    %v596 = vpack.c.b16 %v480, %v478
    %v597 = vpack.c.b16 %v483, %v481
    %v598 = vpack.c.b16 %v484, %v482
    %v599 = vpack.c.b16 %v487, %v485
    %v600 = vpack.c.b16 %v488, %v486
    %v601 = vpack.c.b16 %v491, %v489
    %v602 = vpack.c.b16 %v492, %v490
    %v603 = vpack.c.b16 %v495, %v493
    %v604 = vpack.c.b16 %v496, %v494
    %v605 = vpack.c.b16 %v499, %v497
    %v606 = vpack.c.b16 %v500, %v498
    %v607 = vpack.c.b16 %v503, %v501
    %v608 = vpack.c.b16 %v504, %v502
    %v609 = vpack.c.b16 %v507, %v505
    %v610 = vpack.c.b16 %v508, %v506
    %v611 = vpack.c.b16 %v511, %v509
    %v612 = vpack.c.b16 %v512, %v510
    %v613 = vpack.c.b16 %v515, %v513
    %v614 = vpack.c.b16 %v516, %v514
    %v615 = vpack.c.b16 %v519, %v517
    %v616 = vpack.c.b16 %v520, %v518
    %v617 = vpack.c.b16 %v523, %v521
    %v618 = vpack.c.b16 %v524, %v522
    %v619 = vpack.c.b16 %v527, %v525
    %v620 = vpack.c.b16 %v528, %v526
    %v621 = vpack.c.b16 %v531, %v529
    %v622 = vpack.c.b16 %v532, %v530
    %v623 = vpack.c.b16 %v535, %v533
    %v624 = vpack.c.b16 %v536, %v534
    %v625 = vpack.c.b16 %v539, %v537
    %v626 = vpack.c.b16 %v540, %v538
    %v627 = vpack.c.b16 %v543, %v541
    %v628 = vpack.c.b16 %v544, %v542
    %v629 = vpack.c.b16 %v547, %v545
    %v630 = vpack.c.b16 %v548, %v546
    %v631 = vpack.c.b16 %v551, %v549
    %v632 = vpack.c.b16 %v552, %v550
    %713 = vmatpush.bf16.msra.mxu0 %v567
    %714 = vmatpush.bf16.msra.mxu0 %v565
    %715 = vmatpush.bf16.msra.mxu0 %v563
    %716 = vmatpush.bf16.msra.mxu0 %v561
    %717 = vmatpush.bf16.msra.mxu0 %v559
    %718 = vmatpush.bf16.msra.mxu0 %v557
    %719 = vmatpush.bf16.msra.mxu0 %v555
    %720 = vmatpush.bf16.msra.mxu0 %v553
    %721 = vmatmul.bf16.gmra.mxu0 %v197
    %v722 = vpop.f32.mrf.mxu0
    %v723 = vadd.f32 0.0, %v722
    %v724 = vpop.f32.mrf.mxu0
    %v725 = vadd.f32 0.0, %v724
    %726 = vmatmul.bf16.gmra.mxu0 %v198
    %v727 = vpop.f32.mrf.mxu0
    %v728 = vadd.f32 0.0, %v727
    %v729 = vpop.f32.mrf.mxu0
    %730 = vdwg.mxu0
    %731 = vmatpush.bf16.msra.mxu0 %v583
    %732 = vmatpush.bf16.msra.mxu0 %v581
    %733 = vmatpush.bf16.msra.mxu0 %v579
    %734 = vmatpush.bf16.msra.mxu0 %v577
    %735 = vmatpush.bf16.msra.mxu0 %v575
    %736 = vmatpush.bf16.msra.mxu0 %v573
    %737 = vmatpush.bf16.msra.mxu0 %v571
    %738 = vmatpush.bf16.msra.mxu0 %v569
    %739 = vmatmul.bf16.gmra.mxu0 %v207
    %v740 = vpop.f32.mrf.mxu0
    %v741 = vadd.f32 %v723, %v740
    %v742 = vpop.f32.mrf.mxu0
    %v743 = vadd.f32 %v725, %v742
    %744 = vmatmul.bf16.gmra.mxu0 %v208
    %v745 = vpop.f32.mrf.mxu0
    %v746 = vadd.f32 %v728, %v745
    %v747 = vpop.f32.mrf.mxu0
    %748 = vdwg.mxu0
    %749 = vmatpush.bf16.msra.mxu0 %v599
    %750 = vmatpush.bf16.msra.mxu0 %v597
    %751 = vmatpush.bf16.msra.mxu0 %v595
    %752 = vmatpush.bf16.msra.mxu0 %v593
    %753 = vmatpush.bf16.msra.mxu0 %v591
    %754 = vmatpush.bf16.msra.mxu0 %v589
    %755 = vmatpush.bf16.msra.mxu0 %v587
    %756 = vmatpush.bf16.msra.mxu0 %v585
    %757 = vmatmul.bf16.gmra.mxu0 %v214
    %v758 = vpop.f32.mrf.mxu0
    %v759 = vadd.f32 %v741, %v758
    %v760 = vpop.f32.mrf.mxu0
    %v761 = vadd.f32 %v743, %v760
    %762 = vmatmul.bf16.gmra.mxu0 %v213
    %v763 = vpop.f32.mrf.mxu0
    %v764 = vadd.f32 %v746, %v763
    %v765 = vpop.f32.mrf.mxu0
    %766 = vdwg.mxu0
    %767 = vmatpush.bf16.msra.mxu0 %v615
    %768 = vmatpush.bf16.msra.mxu0 %v613
    %769 = vmatpush.bf16.msra.mxu0 %v611
    %770 = vmatpush.bf16.msra.mxu0 %v609
    %771 = vmatpush.bf16.msra.mxu0 %v607
    %772 = vmatpush.bf16.msra.mxu0 %v605
    %773 = vmatpush.bf16.msra.mxu0 %v603
    %774 = vmatpush.bf16.msra.mxu0 %v601
    %775 = vmatmul.bf16.gmra.mxu0 %v219
    %v776 = vpop.f32.mrf.mxu0
    %v777 = vadd.f32 %v759, %v776
    %v778 = vpop.f32.mrf.mxu0
    %v779 = vadd.f32 %v761, %v778
    %780 = vmatmul.bf16.gmra.mxu0 %v218
    %v781 = vpop.f32.mrf.mxu0
    %v782 = vadd.f32 %v764, %v781
    %v783 = vpop.f32.mrf.mxu0
    %784 = vdwg.mxu0
    %785 = vmatpush.bf16.msra.mxu0 %v631
    %786 = vmatpush.bf16.msra.mxu0 %v629
    %787 = vmatpush.bf16.msra.mxu0 %v627
    %788 = vmatpush.bf16.msra.mxu0 %v625
    %789 = vmatpush.bf16.msra.mxu0 %v623
    %790 = vmatpush.bf16.msra.mxu0 %v621
    %791 = vmatpush.bf16.msra.mxu0 %v619
    %792 = vmatpush.bf16.msra.mxu0 %v617
    %793 = vmatmul.bf16.gmra.mxu0 %v225
    %v794 = vpop.f32.mrf.mxu0
    %v795 = vadd.f32 %v777, %v794
    %v796 = vpop.f32.mrf.mxu0
    %v797 = vadd.f32 %v779, %v796
    %798 = vmatmul.bf16.gmra.mxu0 %v224
    %v799 = vpop.f32.mrf.mxu0
    %v800 = vadd.f32 %v782, %v799
    %v801 = vpop.f32.mrf.mxu0
    %802 = vdwg.mxu0
    %803 = vmatpush.bf16.msra.mxu0 %v568
    %804 = vmatpush.bf16.msra.mxu0 %v566
    %805 = vmatpush.bf16.msra.mxu0 %v564
    %806 = vmatpush.bf16.msra.mxu0 %v562
    %807 = vmatpush.bf16.msra.mxu0 %v560
    %808 = vmatpush.bf16.msra.mxu0 %v558
    %809 = vmatpush.bf16.msra.mxu0 %v556
    %810 = vmatpush.bf16.msra.mxu0 %v554
    %811 = vmatmul.bf16.gmra.mxu0 %v197
    %v812 = vpop.f32.mrf.mxu0
    %v813 = vadd.f32 0.0, %v812
    %v814 = vpop.f32.mrf.mxu0
    %v815 = vadd.f32 0.0, %v814
    %816 = vmatmul.bf16.gmra.mxu0 %v198
    %v817 = vpop.f32.mrf.mxu0
    %v818 = vadd.f32 0.0, %v817
    %v819 = vpop.f32.mrf.mxu0
    %820 = vdwg.mxu0
    %821 = vmatpush.bf16.msra.mxu0 %v584
    %822 = vmatpush.bf16.msra.mxu0 %v582
    %823 = vmatpush.bf16.msra.mxu0 %v580
    %824 = vmatpush.bf16.msra.mxu0 %v578
    %825 = vmatpush.bf16.msra.mxu0 %v576
    %826 = vmatpush.bf16.msra.mxu0 %v574
    %827 = vmatpush.bf16.msra.mxu0 %v572
    %828 = vmatpush.bf16.msra.mxu0 %v570
    %829 = vmatmul.bf16.gmra.mxu0 %v207
    %v830 = vpop.f32.mrf.mxu0
    %v831 = vadd.f32 %v813, %v830
    %v832 = vpop.f32.mrf.mxu0
    %v833 = vadd.f32 %v815, %v832
    %834 = vmatmul.bf16.gmra.mxu0 %v208
    %v835 = vpop.f32.mrf.mxu0
    %v836 = vadd.f32 %v818, %v835
    %v837 = vpop.f32.mrf.mxu0
    %838 = vdwg.mxu0
    %839 = vmatpush.bf16.msra.mxu0 %v600
    %840 = vmatpush.bf16.msra.mxu0 %v598
    %841 = vmatpush.bf16.msra.mxu0 %v596
    %842 = vmatpush.bf16.msra.mxu0 %v594
    %843 = vmatpush.bf16.msra.mxu0 %v592
    %844 = vmatpush.bf16.msra.mxu0 %v590
    %845 = vmatpush.bf16.msra.mxu0 %v588
    %846 = vmatpush.bf16.msra.mxu0 %v586
    %847 = vmatmul.bf16.gmra.mxu0 %v214
    %v848 = vpop.f32.mrf.mxu0
    %v849 = vadd.f32 %v831, %v848
    %v850 = vpop.f32.mrf.mxu0
    %v851 = vadd.f32 %v833, %v850
    %852 = vmatmul.bf16.gmra.mxu0 %v213
    %v853 = vpop.f32.mrf.mxu0
    %v854 = vadd.f32 %v836, %v853
    %v855 = vpop.f32.mrf.mxu0
    %856 = vdwg.mxu0
    %857 = vmatpush.bf16.msra.mxu0 %v616
    %858 = vmatpush.bf16.msra.mxu0 %v614
    %859 = vmatpush.bf16.msra.mxu0 %v612
    %860 = vmatpush.bf16.msra.mxu0 %v610
    %861 = vmatpush.bf16.msra.mxu0 %v608
    %862 = vmatpush.bf16.msra.mxu0 %v606
    %863 = vmatpush.bf16.msra.mxu0 %v604
    %864 = vmatpush.bf16.msra.mxu0 %v602
    %865 = vmatmul.bf16.gmra.mxu0 %v219
    %v866 = vpop.f32.mrf.mxu0
    %v867 = vadd.f32 %v849, %v866
    %v868 = vpop.f32.mrf.mxu0
    %v869 = vadd.f32 %v851, %v868
    %870 = vmatmul.bf16.gmra.mxu0 %v218
    %v871 = vpop.f32.mrf.mxu0
    %v872 = vadd.f32 %v854, %v871
    %v873 = vpop.f32.mrf.mxu0
    %874 = vdwg.mxu0
    %875 = vmatpush.bf16.msra.mxu0 %v632
    %876 = vmatpush.bf16.msra.mxu0 %v630
    %877 = vmatpush.bf16.msra.mxu0 %v628
    %878 = vmatpush.bf16.msra.mxu0 %v626
    %879 = vmatpush.bf16.msra.mxu0 %v624
    %880 = vmatpush.bf16.msra.mxu0 %v622
    %881 = vmatpush.bf16.msra.mxu0 %v620
    %882 = vmatpush.bf16.msra.mxu0 %v618
    %883 = vmatmul.bf16.gmra.mxu0 %v225
    %v884 = vpop.f32.mrf.mxu0
    %v885 = vadd.f32 %v867, %v884
    %v886 = vpop.f32.mrf.mxu0
    %v887 = vadd.f32 %v869, %v886
    %888 = vmatmul.bf16.gmra.mxu0 %v224
    %v889 = vpop.f32.mrf.mxu0
    %v890 = vadd.f32 %v872, %v889
    %v891 = vpop.f32.mrf.mxu0
    %892 = vdwg.mxu0
    %893 = vmatpush.bf16.msra.mxu0 %v567
    %894 = vmatpush.bf16.msra.mxu0 %v565
    %895 = vmatpush.bf16.msra.mxu0 %v563
    %896 = vmatpush.bf16.msra.mxu0 %v561
    %897 = vmatpush.bf16.msra.mxu0 %v559
    %898 = vmatpush.bf16.msra.mxu0 %v557
    %899 = vmatpush.bf16.msra.mxu0 %v555
    %900 = vmatpush.bf16.msra.mxu0 %v553
    %901 = vmatmul.bf16.gmra.mxu0 %v207
    %v902 = vpop.f32.mrf.mxu0
    %v903 = vadd.f32 0.0, %v902
    %v904 = vpop.f32.mrf.mxu0
    %v905 = vadd.f32 0.0, %v904
    %906 = vmatmul.bf16.gmra.mxu0 %v208
    %v907 = vpop.f32.mrf.mxu0
    %v908 = vadd.f32 0.0, %v907
    %v909 = vpop.f32.mrf.mxu0
    %910 = vdwg.mxu0
    %911 = vmatpush.bf16.msra.mxu0 %v583
    %912 = vmatpush.bf16.msra.mxu0 %v581
    %913 = vmatpush.bf16.msra.mxu0 %v579
    %914 = vmatpush.bf16.msra.mxu0 %v577
    %915 = vmatpush.bf16.msra.mxu0 %v575
    %916 = vmatpush.bf16.msra.mxu0 %v573
    %917 = vmatpush.bf16.msra.mxu0 %v571
    %918 = vmatpush.bf16.msra.mxu0 %v569
    %919 = vmatmul.bf16.gmra.mxu0 %v214
    %v920 = vpop.f32.mrf.mxu0
    %v921 = vadd.f32 %v903, %v920
    %v922 = vpop.f32.mrf.mxu0
    %v923 = vadd.f32 %v905, %v922
    %924 = vmatmul.bf16.gmra.mxu0 %v213
    %v925 = vpop.f32.mrf.mxu0
    %v926 = vadd.f32 %v908, %v925
    %v927 = vpop.f32.mrf.mxu0
    %928 = vdwg.mxu0
    %929 = vmatpush.bf16.msra.mxu0 %v599
    %930 = vmatpush.bf16.msra.mxu0 %v597
    %931 = vmatpush.bf16.msra.mxu0 %v595
    %932 = vmatpush.bf16.msra.mxu0 %v593
    %933 = vmatpush.bf16.msra.mxu0 %v591
    %934 = vmatpush.bf16.msra.mxu0 %v589
    %935 = vmatpush.bf16.msra.mxu0 %v587
    %936 = vmatpush.bf16.msra.mxu0 %v585
    %937 = vmatmul.bf16.gmra.mxu0 %v219
    %v938 = vpop.f32.mrf.mxu0
    %v939 = vadd.f32 %v921, %v938
    %v940 = vpop.f32.mrf.mxu0
    %v941 = vadd.f32 %v923, %v940
    %942 = vmatmul.bf16.gmra.mxu0 %v218
    %v943 = vpop.f32.mrf.mxu0
    %v944 = vadd.f32 %v926, %v943
    %v945 = vpop.f32.mrf.mxu0
    %946 = vdwg.mxu0
    %947 = vmatpush.bf16.msra.mxu0 %v615
    %948 = vmatpush.bf16.msra.mxu0 %v613
    %949 = vmatpush.bf16.msra.mxu0 %v611
    %950 = vmatpush.bf16.msra.mxu0 %v609
    %951 = vmatpush.bf16.msra.mxu0 %v607
    %952 = vmatpush.bf16.msra.mxu0 %v605
    %953 = vmatpush.bf16.msra.mxu0 %v603
    %954 = vmatpush.bf16.msra.mxu0 %v601
    %955 = vmatmul.bf16.gmra.mxu0 %v225
    %v956 = vpop.f32.mrf.mxu0
    %v957 = vadd.f32 %v939, %v956
    %v958 = vpop.f32.mrf.mxu0
    %v959 = vadd.f32 %v941, %v958
    %960 = vmatmul.bf16.gmra.mxu0 %v224
    %v961 = vpop.f32.mrf.mxu0
    %v962 = vadd.f32 %v944, %v961
    %v963 = vpop.f32.mrf.mxu0
    %964 = vdwg.mxu0
    %965 = vmatpush.bf16.msra.mxu0 %v631
    %966 = vmatpush.bf16.msra.mxu0 %v629
    %967 = vmatpush.bf16.msra.mxu0 %v627
    %968 = vmatpush.bf16.msra.mxu0 %v625
    %969 = vmatpush.bf16.msra.mxu0 %v623
    %970 = vmatpush.bf16.msra.mxu0 %v621
    %971 = vmatpush.bf16.msra.mxu0 %v619
    %972 = vmatpush.bf16.msra.mxu0 %v617
    %973 = vmatmul.bf16.gmra.mxu0 %v230
    %v974 = vpop.f32.mrf.mxu0
    %v975 = vadd.f32 %v957, %v974
    %v976 = vpop.f32.mrf.mxu0
    %v977 = vadd.f32 %v959, %v976
    %978 = vmatmul.bf16.gmra.mxu0 %v229
    %v979 = vpop.f32.mrf.mxu0
    %v980 = vadd.f32 %v962, %v979
    %v981 = vpop.f32.mrf.mxu0
    %982 = vdwg.mxu0
    %983 = vmatpush.bf16.msra.mxu0 %v568
    %984 = vmatpush.bf16.msra.mxu0 %v566
    %985 = vmatpush.bf16.msra.mxu0 %v564
    %986 = vmatpush.bf16.msra.mxu0 %v562
    %987 = vmatpush.bf16.msra.mxu0 %v560
    %988 = vmatpush.bf16.msra.mxu0 %v558
    %989 = vmatpush.bf16.msra.mxu0 %v556
    %990 = vmatpush.bf16.msra.mxu0 %v554
    %991 = vmatmul.bf16.gmra.mxu0 %v207
    %v992 = vpop.f32.mrf.mxu0
    %v993 = vadd.f32 0.0, %v992
    %v994 = vpop.f32.mrf.mxu0
    %v995 = vadd.f32 0.0, %v994
    %996 = vmatmul.bf16.gmra.mxu0 %v208
    %v997 = vpop.f32.mrf.mxu0
    %v998 = vadd.f32 0.0, %v997
    %v999 = vpop.f32.mrf.mxu0
    %1000 = vdwg.mxu0
    %1001 = vmatpush.bf16.msra.mxu0 %v584
    %1002 = vmatpush.bf16.msra.mxu0 %v582
    %1003 = vmatpush.bf16.msra.mxu0 %v580
    %1004 = vmatpush.bf16.msra.mxu0 %v578
    %1005 = vmatpush.bf16.msra.mxu0 %v576
    %1006 = vmatpush.bf16.msra.mxu0 %v574
    %1007 = vmatpush.bf16.msra.mxu0 %v572
    %1008 = vmatpush.bf16.msra.mxu0 %v570
    %1009 = vmatmul.bf16.gmra.mxu0 %v214
    %v1010 = vpop.f32.mrf.mxu0
    %v1011 = vadd.f32 %v993, %v1010
    %v1012 = vpop.f32.mrf.mxu0
    %v1013 = vadd.f32 %v995, %v1012
    %1014 = vmatmul.bf16.gmra.mxu0 %v213
    %v1015 = vpop.f32.mrf.mxu0
    %v1016 = vadd.f32 %v998, %v1015
    %v1017 = vpop.f32.mrf.mxu0
    %1018 = vdwg.mxu0
    %1019 = vmatpush.bf16.msra.mxu0 %v600
    %1020 = vmatpush.bf16.msra.mxu0 %v598
    %1021 = vmatpush.bf16.msra.mxu0 %v596
    %1022 = vmatpush.bf16.msra.mxu0 %v594
    %1023 = vmatpush.bf16.msra.mxu0 %v592
    %1024 = vmatpush.bf16.msra.mxu0 %v590
    %1025 = vmatpush.bf16.msra.mxu0 %v588
    %1026 = vmatpush.bf16.msra.mxu0 %v586
    %1027 = vmatmul.bf16.gmra.mxu0 %v219
    %v1028 = vpop.f32.mrf.mxu0
    %v1029 = vadd.f32 %v1011, %v1028
    %v1030 = vpop.f32.mrf.mxu0
    %v1031 = vadd.f32 %v1013, %v1030
    %1032 = vmatmul.bf16.gmra.mxu0 %v218
    %v1033 = vpop.f32.mrf.mxu0
    %v1034 = vadd.f32 %v1016, %v1033
    %v1035 = vpop.f32.mrf.mxu0
    %1036 = vdwg.mxu0
    %1037 = vmatpush.bf16.msra.mxu0 %v616
    %1038 = vmatpush.bf16.msra.mxu0 %v614
    %1039 = vmatpush.bf16.msra.mxu0 %v612
    %1040 = vmatpush.bf16.msra.mxu0 %v610
    %1041 = vmatpush.bf16.msra.mxu0 %v608
    %1042 = vmatpush.bf16.msra.mxu0 %v606
    %1043 = vmatpush.bf16.msra.mxu0 %v604
    %1044 = vmatpush.bf16.msra.mxu0 %v602
    %1045 = vmatmul.bf16.gmra.mxu0 %v225
    %v1046 = vpop.f32.mrf.mxu0
    %v1047 = vadd.f32 %v1029, %v1046
    %v1048 = vpop.f32.mrf.mxu0
    %v1049 = vadd.f32 %v1031, %v1048
    %1050 = vmatmul.bf16.gmra.mxu0 %v224
    %v1051 = vpop.f32.mrf.mxu0
    %v1052 = vadd.f32 %v1034, %v1051
    %v1053 = vpop.f32.mrf.mxu0
    %1054 = vdwg.mxu0
    %1055 = vmatpush.bf16.msra.mxu0 %v632
    %1056 = vmatpush.bf16.msra.mxu0 %v630
    %1057 = vmatpush.bf16.msra.mxu0 %v628
    %1058 = vmatpush.bf16.msra.mxu0 %v626
    %1059 = vmatpush.bf16.msra.mxu0 %v624
    %1060 = vmatpush.bf16.msra.mxu0 %v622
    %1061 = vmatpush.bf16.msra.mxu0 %v620
    %1062 = vmatpush.bf16.msra.mxu0 %v618
    %1063 = vmatmul.bf16.gmra.mxu0 %v230
    %v1064 = vpop.f32.mrf.mxu0
    %v1065 = vadd.f32 %v1047, %v1064
    %v1066 = vpop.f32.mrf.mxu0
    %v1067 = vadd.f32 %v1049, %v1066
    %1068 = vmatmul.bf16.gmra.mxu0 %v229
    %v1069 = vpop.f32.mrf.mxu0
    %v1070 = vadd.f32 %v1052, %v1069
    %v1071 = vpop.f32.mrf.mxu0
    %1072 = vdwg.mxu0
    %v1073 = vmax.f32 %v795, %v975
    %v1074 = vmax.f32 %v885, %v1065
    %v1075 = vmax.f32 %v797, %v977
    %v1076 = vmax.f32 %v887, %v1067
    %v1077 = vmax.f32 %v800, %v980
    %v1078 = vmax.f32 %v890, %v1070
    %v1079 = vld [vmem:[%s4] sm:$0x3]
    %v1081 = vperm.slane %v1079, 0
    %v1082 = vperm.slane %v1079, 1
    %v1085 = vadd.f32 %v1073, %v1081
    %v1086 = vadd.f32 %v1074, %v1082
    %v1087 = vadd.f32 %v1075, %v1081
    %v1088 = vadd.f32 %v1076, %v1082
    %v1089 = vadd.f32 %v1077, %v1081
    %v1090 = vadd.f32 %v1078, %v1082
    %v1091 = vmax.f32 %v1085, 0.0
    %v1092 = vmax.f32 %v1086, 0.0
    %v1093 = vmax.f32 %v1087, 0.0
    %v1094 = vmax.f32 %v1088, 0.0
    %v1095 = vmax.f32 %v1089, 0.0
    %v1096 = vmax.f32 %v1090, 0.0
    %v1097 = vpack.c.bf16 %v1092, %v1091
    %v1098 = vpack.c.bf16 %v1094, %v1093
    %v1099 = vpack.c.bf16 %v1096, %v1095
    %v1102 = vunpack.c.l.b16 %v1097
    %v1103 = vunpack.c.h.b16 %v1097
    %v1104 = vunpack.c.l.b16 %v1098
    %v1105 = vunpack.c.h.b16 %v1098
    %v1106 = vpack.c.b16 %v1104, %v1102
    %v1107 = vpack.c.b16 %v1105, %v1103
    %v1111 = vunpack.c.l.b16 %v1099
    %v1112 = vunpack.c.h.b16 %v1099
    %v1113 = vpack.c.b16 %v1111, %v1111
    %v1114 = vpack.c.b16 %v1112, %v1112
    %v1115 = vrot.slane %v1106, 1
    %v1116 = vrot.slane %v1113, 1
    %v1117 = vsel %vm211, %v1115, %v1116
    %v1118 = vrot.slane %v1107, 1
    %v1119 = vrot.slane %v1114, 1
    %v1120 = vsel %vm211, %v1118, %v1119
    %v1123 = vrot.slane %v1106, 2
    %v1124 = vrot.slane %v1113, 2
    %v1125 = vsel %vm222, %v1123, %v1124
    %v1126 = vrot.slane %v1107, 2
    %v1127 = vrot.slane %v1114, 2
    %v1128 = vsel %vm222, %v1126, %v1127
    %v1131 = vld [vmem:[#allocation5] sm:$0xf]
    %v1132 = vld [vmem:[#allocation5 + $0x4] sm:$0xf]
    %v1133 = vld [vmem:[#allocation5 + $0x8] sm:$0xf]
    %v1134 = vld [vmem:[#allocation5 + $0xc] sm:$0xf]
    %v1135 = vld [vmem:[#allocation5 + $0x10] sm:$0xf]
    %v1136 = vld [vmem:[#allocation5 + $0x14] sm:$0xf]
    %v1137 = vld [vmem:[#allocation5 + $0x18] sm:$0xf]
    %v1138 = vld [vmem:[#allocation5 + $0x1c] sm:$0xf]
    %v1139 = vld [vmem:[#allocation5 + $0x20] sm:$0xf]
    %v1140 = vld [vmem:[#allocation5 + $0x24] sm:$0xf]
    %v1141 = vld [vmem:[#allocation5 + $0x28] sm:$0xf]
    %v1142 = vld [vmem:[#allocation5 + $0x2c] sm:$0xf]
    %v1143 = vld [vmem:[#allocation5 + $0x30] sm:$0xf]
    %v1144 = vld [vmem:[#allocation5 + $0x34] sm:$0xf]
    %v1145 = vld [vmem:[#allocation5 + $0x38] sm:$0xf]
    %v1146 = vld [vmem:[#allocation5 + $0x3c] sm:$0xf]
    %v1147 = vld [vmem:[#allocation5 + $0x40] sm:$0xf]
    %v1148 = vld [vmem:[#allocation5 + $0x44] sm:$0xf]
    %v1149 = vld [vmem:[#allocation5 + $0x48] sm:$0xf]
    %v1150 = vld [vmem:[#allocation5 + $0x4c] sm:$0xf]
    %v1151 = vld [vmem:[#allocation5 + $0x50] sm:$0xf]
    %v1152 = vld [vmem:[#allocation5 + $0x54] sm:$0xf]
    %v1153 = vld [vmem:[#allocation5 + $0x58] sm:$0xf]
    %v1154 = vld [vmem:[#allocation5 + $0x5c] sm:$0xf]
    %v1155 = vld [vmem:[#allocation5 + $0x60] sm:$0xf]
    %v1156 = vld [vmem:[#allocation5 + $0x64] sm:$0xf]
    %v1157 = vld [vmem:[#allocation5 + $0x68] sm:$0xf]
    %v1158 = vld [vmem:[#allocation5 + $0x6c] sm:$0xf]
    %v1159 = vld [vmem:[#allocation5 + $0x70] sm:$0xf]
    %v1160 = vld [vmem:[#allocation5 + $0x74] sm:$0xf]
    %v1161 = vld [vmem:[#allocation5 + $0x78] sm:$0xf]
    %v1162 = vld [vmem:[#allocation5 + $0x7c] sm:$0xf]
    %v1163 = vld [vmem:[#allocation5 + $0x80] sm:$0xf]
    %v1164 = vld [vmem:[#allocation5 + $0x84] sm:$0xf]
    %v1165 = vld [vmem:[#allocation5 + $0x88] sm:$0xf]
    %v1166 = vld [vmem:[#allocation5 + $0x8c] sm:$0xf]
    %v1167 = vld [vmem:[#allocation5 + $0x90] sm:$0xf]
    %v1168 = vld [vmem:[#allocation5 + $0x94] sm:$0xf]
    %v1169 = vld [vmem:[#allocation5 + $0x98] sm:$0xf]
    %v1170 = vld [vmem:[#allocation5 + $0x9c] sm:$0xf]
    %v1171 = vld [vmem:[#allocation5 + $0xa0] sm:$0xf]
    %v1172 = vld [vmem:[#allocation5 + $0xa4] sm:$0xf]
    %v1173 = vld [vmem:[#allocation5 + $0xa8] sm:$0xf]
    %v1174 = vld [vmem:[#allocation5 + $0xac] sm:$0xf]
    %v1175 = vld [vmem:[#allocation5 + $0xb0] sm:$0xf]
    %v1176 = vld [vmem:[#allocation5 + $0xb4] sm:$0xf]
    %v1177 = vld [vmem:[#allocation5 + $0xb8] sm:$0xf]
    %v1178 = vld [vmem:[#allocation5 + $0xbc] sm:$0xf]
    %v1179 = vld [vmem:[#allocation5 + $0xc0] sm:$0xf]
    %v1180 = vld [vmem:[#allocation5 + $0xc4] sm:$0xf]
    %v1181 = vld [vmem:[#allocation5 + $0xc8] sm:$0xf]
    %v1182 = vld [vmem:[#allocation5 + $0xcc] sm:$0xf]
    %v1183 = vld [vmem:[#allocation5 + $0xd0] sm:$0xf]
    %v1184 = vld [vmem:[#allocation5 + $0xd4] sm:$0xf]
    %v1185 = vld [vmem:[#allocation5 + $0xd8] sm:$0xf]
    %v1186 = vld [vmem:[#allocation5 + $0xdc] sm:$0xf]
    %v1187 = vld [vmem:[#allocation5 + $0xe0] sm:$0xf]
    %v1188 = vld [vmem:[#allocation5 + $0xe4] sm:$0xf]
    %v1189 = vld [vmem:[#allocation5 + $0xe8] sm:$0xf]
    %v1190 = vld [vmem:[#allocation5 + $0xec] sm:$0xf]
    %v1191 = vld [vmem:[#allocation5 + $0xf0] sm:$0xf]
    %v1192 = vld [vmem:[#allocation5 + $0xf4] sm:$0xf]
    %v1193 = vld [vmem:[#allocation5 + $0xf8] sm:$0xf]
    %v1194 = vld [vmem:[#allocation5 + $0xfc] sm:$0xf]
    %v1195 = vld [vmem:[#allocation5 + $0x100] sm:$0xf]
    %v1196 = vld [vmem:[#allocation5 + $0x104] sm:$0xf]
    %v1197 = vld [vmem:[#allocation5 + $0x108] sm:$0xf]
    %v1198 = vld [vmem:[#allocation5 + $0x10c] sm:$0xf]
    %v1199 = vld [vmem:[#allocation5 + $0x110] sm:$0xf]
    %v1200 = vld [vmem:[#allocation5 + $0x114] sm:$0xf]
    %v1201 = vld [vmem:[#allocation5 + $0x118] sm:$0xf]
    %v1202 = vld [vmem:[#allocation5 + $0x11c] sm:$0xf]
    %v1203 = vld [vmem:[#allocation5 + $0x120] sm:$0xf]
    %v1204 = vld [vmem:[#allocation5 + $0x124] sm:$0xf]
    %v1205 = vld [vmem:[#allocation5 + $0x128] sm:$0xf]
    %v1206 = vld [vmem:[#allocation5 + $0x12c] sm:$0xf]
    %v1207 = vld [vmem:[#allocation5 + $0x130] sm:$0xf]
    %v1208 = vld [vmem:[#allocation5 + $0x134] sm:$0xf]
    %v1209 = vld [vmem:[#allocation5 + $0x138] sm:$0xf]
    %v1210 = vld [vmem:[#allocation5 + $0x13c] sm:$0xf]
    %v1211 = vld [vmem:[#allocation5 + $0x140] sm:$0xf]
    %v1212 = vld [vmem:[#allocation5 + $0x144] sm:$0xf]
    %v1213 = vld [vmem:[#allocation5 + $0x148] sm:$0xf]
    %v1214 = vld [vmem:[#allocation5 + $0x14c] sm:$0xf]
    %v1215 = vld [vmem:[#allocation5 + $0x150] sm:$0xf]
    %v1216 = vld [vmem:[#allocation5 + $0x154] sm:$0xf]
    %v1217 = vld [vmem:[#allocation5 + $0x158] sm:$0xf]
    %v1218 = vld [vmem:[#allocation5 + $0x15c] sm:$0xf]
    %v1219 = vld [vmem:[#allocation5 + $0x160] sm:$0xf]
    %v1220 = vld [vmem:[#allocation5 + $0x164] sm:$0xf]
    %v1221 = vld [vmem:[#allocation5 + $0x168] sm:$0xf]
    %v1222 = vld [vmem:[#allocation5 + $0x16c] sm:$0xf]
    %v1223 = vld [vmem:[#allocation5 + $0x170] sm:$0xf]
    %v1224 = vld [vmem:[#allocation5 + $0x174] sm:$0xf]
    %v1225 = vld [vmem:[#allocation5 + $0x178] sm:$0xf]
    %v1226 = vld [vmem:[#allocation5 + $0x17c] sm:$0xf]
    %v1323 = vunpack.c.l.b16 %v1131
    %v1324 = vunpack.c.l.b16 %v1132
    %v1325 = vunpack.c.l.b16 %v1133
    %v1326 = vunpack.c.l.b16 %v1134
    %v1327 = vunpack.c.l.b16 %v1135
    %v1328 = vunpack.c.l.b16 %v1136
    %v1329 = vunpack.c.l.b16 %v1137
    %v1330 = vunpack.c.l.b16 %v1138
    %v1331 = vunpack.c.l.b16 %v1139
    %v1332 = vunpack.c.l.b16 %v1140
    %v1333 = vunpack.c.l.b16 %v1141
    %v1334 = vunpack.c.l.b16 %v1142
    %v1335 = vunpack.c.l.b16 %v1143
    %v1336 = vunpack.c.l.b16 %v1144
    %v1337 = vunpack.c.l.b16 %v1145
    %v1338 = vunpack.c.l.b16 %v1146
    %v1339 = vunpack.c.l.b16 %v1147
    %v1340 = vunpack.c.l.b16 %v1148
    %v1341 = vunpack.c.l.b16 %v1149
    %v1342 = vunpack.c.l.b16 %v1150
    %v1343 = vunpack.c.l.b16 %v1151
    %v1344 = vunpack.c.l.b16 %v1152
    %v1345 = vunpack.c.l.b16 %v1153
    %v1346 = vunpack.c.l.b16 %v1154
    %v1347 = vunpack.c.l.b16 %v1155
    %v1348 = vunpack.c.l.b16 %v1156
    %v1349 = vunpack.c.l.b16 %v1157
    %v1350 = vunpack.c.l.b16 %v1158
    %v1351 = vunpack.c.l.b16 %v1159
    %v1352 = vunpack.c.l.b16 %v1160
    %v1353 = vunpack.c.l.b16 %v1161
    %v1354 = vunpack.c.l.b16 %v1162
    %v1355 = vunpack.c.l.b16 %v1163
    %v1356 = vunpack.c.l.b16 %v1164
    %v1357 = vunpack.c.l.b16 %v1165
    %v1358 = vunpack.c.l.b16 %v1166
    %v1359 = vunpack.c.l.b16 %v1167
    %v1360 = vunpack.c.l.b16 %v1168
    %v1361 = vunpack.c.l.b16 %v1169
    %v1362 = vunpack.c.l.b16 %v1170
    %v1363 = vunpack.c.l.b16 %v1171
    %v1364 = vunpack.c.l.b16 %v1172
    %v1365 = vunpack.c.l.b16 %v1173
    %v1366 = vunpack.c.l.b16 %v1174
    %v1367 = vunpack.c.l.b16 %v1175
    %v1368 = vunpack.c.l.b16 %v1176
    %v1369 = vunpack.c.l.b16 %v1177
    %v1370 = vunpack.c.l.b16 %v1178
    %v1371 = vunpack.c.l.b16 %v1179
    %v1372 = vunpack.c.l.b16 %v1180
    %v1373 = vunpack.c.l.b16 %v1181
    %v1374 = vunpack.c.l.b16 %v1182
    %v1375 = vunpack.c.l.b16 %v1183
    %v1376 = vunpack.c.l.b16 %v1184
    %v1377 = vunpack.c.l.b16 %v1185
    %v1378 = vunpack.c.l.b16 %v1186
    %v1379 = vunpack.c.l.b16 %v1187
    %v1380 = vunpack.c.l.b16 %v1188
    %v1381 = vunpack.c.l.b16 %v1189
    %v1382 = vunpack.c.l.b16 %v1190
    %v1383 = vunpack.c.l.b16 %v1191
    %v1384 = vunpack.c.l.b16 %v1192
    %v1385 = vunpack.c.l.b16 %v1193
    %v1386 = vunpack.c.l.b16 %v1194
    %v1387 = vunpack.c.l.b16 %v1195
    %v1388 = vunpack.c.l.b16 %v1196
    %v1389 = vunpack.c.l.b16 %v1197
    %v1390 = vunpack.c.l.b16 %v1198
    %v1391 = vunpack.c.l.b16 %v1199
    %v1392 = vunpack.c.l.b16 %v1200
    %v1393 = vunpack.c.l.b16 %v1201
    %v1394 = vunpack.c.l.b16 %v1202
    %v1395 = vunpack.c.l.b16 %v1203
    %v1396 = vunpack.c.l.b16 %v1204
    %v1397 = vunpack.c.l.b16 %v1205
    %v1398 = vunpack.c.l.b16 %v1206
    %v1399 = vunpack.c.l.b16 %v1207
    %v1400 = vunpack.c.l.b16 %v1208
    %v1401 = vunpack.c.l.b16 %v1209
    %v1402 = vunpack.c.l.b16 %v1210
    %v1403 = vunpack.c.l.b16 %v1211
    %v1404 = vunpack.c.l.b16 %v1212
    %v1405 = vunpack.c.l.b16 %v1213
    %v1406 = vunpack.c.l.b16 %v1214
    %v1407 = vunpack.c.l.b16 %v1215
    %v1408 = vunpack.c.l.b16 %v1216
    %v1409 = vunpack.c.l.b16 %v1217
    %v1410 = vunpack.c.l.b16 %v1218
    %v1411 = vunpack.c.l.b16 %v1219
    %v1412 = vunpack.c.l.b16 %v1220
    %v1413 = vunpack.c.l.b16 %v1221
    %v1414 = vunpack.c.l.b16 %v1222
    %v1415 = vunpack.c.l.b16 %v1223
    %v1416 = vunpack.c.l.b16 %v1224
    %v1417 = vunpack.c.l.b16 %v1225
    %v1418 = vunpack.c.l.b16 %v1226
    %v1419 = vpack.c.b16 %v1324, %v1323
    %v1420 = vpack.c.b16 %v1326, %v1325
    %v1421 = vpack.c.b16 %v1328, %v1327
    %v1422 = vpack.c.b16 %v1330, %v1329
    %v1423 = vpack.c.b16 %v1332, %v1331
    %v1424 = vpack.c.b16 %v1334, %v1333
    %v1425 = vpack.c.b16 %v1336, %v1335
    %v1426 = vpack.c.b16 %v1338, %v1337
    %v1427 = vpack.c.b16 %v1340, %v1339
    %v1428 = vpack.c.b16 %v1342, %v1341
    %v1429 = vpack.c.b16 %v1344, %v1343
    %v1430 = vpack.c.b16 %v1346, %v1345
    %v1431 = vpack.c.b16 %v1348, %v1347
    %v1432 = vpack.c.b16 %v1350, %v1349
    %v1433 = vpack.c.b16 %v1352, %v1351
    %v1434 = vpack.c.b16 %v1354, %v1353
    %v1435 = vpack.c.b16 %v1356, %v1355
    %v1436 = vpack.c.b16 %v1358, %v1357
    %v1437 = vpack.c.b16 %v1360, %v1359
    %v1438 = vpack.c.b16 %v1362, %v1361
    %v1439 = vpack.c.b16 %v1364, %v1363
    %v1440 = vpack.c.b16 %v1366, %v1365
    %v1441 = vpack.c.b16 %v1368, %v1367
    %v1442 = vpack.c.b16 %v1370, %v1369
    %v1443 = vpack.c.b16 %v1372, %v1371
    %v1444 = vpack.c.b16 %v1374, %v1373
    %v1445 = vpack.c.b16 %v1376, %v1375
    %v1446 = vpack.c.b16 %v1378, %v1377
    %v1447 = vpack.c.b16 %v1380, %v1379
    %v1448 = vpack.c.b16 %v1382, %v1381
    %v1449 = vpack.c.b16 %v1384, %v1383
    %v1450 = vpack.c.b16 %v1386, %v1385
    %v1451 = vpack.c.b16 %v1388, %v1387
    %v1452 = vpack.c.b16 %v1390, %v1389
    %v1453 = vpack.c.b16 %v1392, %v1391
    %v1454 = vpack.c.b16 %v1394, %v1393
    %v1455 = vpack.c.b16 %v1396, %v1395
    %v1456 = vpack.c.b16 %v1398, %v1397
    %v1457 = vpack.c.b16 %v1400, %v1399
    %v1458 = vpack.c.b16 %v1402, %v1401
    %v1459 = vpack.c.b16 %v1404, %v1403
    %v1460 = vpack.c.b16 %v1406, %v1405
    %v1461 = vpack.c.b16 %v1408, %v1407
    %v1462 = vpack.c.b16 %v1410, %v1409
    %v1463 = vpack.c.b16 %v1412, %v1411
    %v1464 = vpack.c.b16 %v1414, %v1413
    %v1465 = vpack.c.b16 %v1416, %v1415
    %v1466 = vpack.c.b16 %v1418, %v1417
    %1515 = vmatpush.bf16.msra.mxu0 %v1426
    %1516 = vmatpush.bf16.msra.mxu0 %v1425
    %1517 = vmatpush.bf16.msra.mxu0 %v1424
    %1518 = vmatpush.bf16.msra.mxu0 %v1423
    %1519 = vmatpush.bf16.msra.mxu0 %v1422
    %1520 = vmatpush.bf16.msra.mxu0 %v1421
    %1521 = vmatpush.bf16.msra.mxu0 %v1420
    %1522 = vmatpush.bf16.msra.mxu0 %v1419
    %1523 = vmatmul.bf16.gmra.mxu0 %v1106
    %v1524 = vpop.f32.mrf.mxu0
    %v1525 = vadd.f32 0.0, %v1524
    %v1526 = vpop.f32.mrf.mxu0
    %v1527 = vadd.f32 0.0, %v1526
    %1528 = vdwg.mxu0
    %1529 = vmatpush.bf16.msra.mxu0 %v1434
    %1530 = vmatpush.bf16.msra.mxu0 %v1433
    %1531 = vmatpush.bf16.msra.mxu0 %v1432
    %1532 = vmatpush.bf16.msra.mxu0 %v1431
    %1533 = vmatpush.bf16.msra.mxu0 %v1430
    %1534 = vmatpush.bf16.msra.mxu0 %v1429
    %1535 = vmatpush.bf16.msra.mxu0 %v1428
    %1536 = vmatpush.bf16.msra.mxu0 %v1427
    %1537 = vmatmul.bf16.gmra.mxu0 %v1107
    %v1538 = vpop.f32.mrf.mxu0
    %v1539 = vadd.f32 %v1525, %v1538
    %v1540 = vpop.f32.mrf.mxu0
    %v1541 = vadd.f32 %v1527, %v1540
    %1542 = vdwg.mxu0
    %1543 = vmatpush.bf16.msra.mxu0 %v1442
    %1544 = vmatpush.bf16.msra.mxu0 %v1441
    %1545 = vmatpush.bf16.msra.mxu0 %v1440
    %1546 = vmatpush.bf16.msra.mxu0 %v1439
    %1547 = vmatpush.bf16.msra.mxu0 %v1438
    %1548 = vmatpush.bf16.msra.mxu0 %v1437
    %1549 = vmatpush.bf16.msra.mxu0 %v1436
    %1550 = vmatpush.bf16.msra.mxu0 %v1435
    %1551 = vmatmul.bf16.gmra.mxu0 %v1117
    %v1552 = vpop.f32.mrf.mxu0
    %v1553 = vadd.f32 %v1539, %v1552
    %v1554 = vpop.f32.mrf.mxu0
    %v1555 = vadd.f32 %v1541, %v1554
    %1556 = vdwg.mxu0
    %1557 = vmatpush.bf16.msra.mxu0 %v1450
    %1558 = vmatpush.bf16.msra.mxu0 %v1449
    %1559 = vmatpush.bf16.msra.mxu0 %v1448
    %1560 = vmatpush.bf16.msra.mxu0 %v1447
    %1561 = vmatpush.bf16.msra.mxu0 %v1446
    %1562 = vmatpush.bf16.msra.mxu0 %v1445
    %1563 = vmatpush.bf16.msra.mxu0 %v1444
    %1564 = vmatpush.bf16.msra.mxu0 %v1443
    %1565 = vmatmul.bf16.gmra.mxu0 %v1120
    %v1566 = vpop.f32.mrf.mxu0
    %v1567 = vadd.f32 %v1553, %v1566
    %v1568 = vpop.f32.mrf.mxu0
    %v1569 = vadd.f32 %v1555, %v1568
    %1570 = vdwg.mxu0
    %1571 = vmatpush.bf16.msra.mxu0 %v1458
    %1572 = vmatpush.bf16.msra.mxu0 %v1457
    %1573 = vmatpush.bf16.msra.mxu0 %v1456
    %1574 = vmatpush.bf16.msra.mxu0 %v1455
    %1575 = vmatpush.bf16.msra.mxu0 %v1454
    %1576 = vmatpush.bf16.msra.mxu0 %v1453
    %1577 = vmatpush.bf16.msra.mxu0 %v1452
    %1578 = vmatpush.bf16.msra.mxu0 %v1451
    %1579 = vmatmul.bf16.gmra.mxu0 %v1125
    %v1580 = vpop.f32.mrf.mxu0
    %v1581 = vadd.f32 %v1567, %v1580
    %v1582 = vpop.f32.mrf.mxu0
    %v1583 = vadd.f32 %v1569, %v1582
    %1584 = vdwg.mxu0
    %1585 = vmatpush.bf16.msra.mxu0 %v1466
    %1586 = vmatpush.bf16.msra.mxu0 %v1465
    %1587 = vmatpush.bf16.msra.mxu0 %v1464
    %1588 = vmatpush.bf16.msra.mxu0 %v1463
    %1589 = vmatpush.bf16.msra.mxu0 %v1462
    %1590 = vmatpush.bf16.msra.mxu0 %v1461
    %1591 = vmatpush.bf16.msra.mxu0 %v1460
    %1592 = vmatpush.bf16.msra.mxu0 %v1459
    %1593 = vmatmul.bf16.gmra.mxu0 %v1128
    %v1594 = vpop.f32.mrf.mxu0
    %v1595 = vadd.f32 %v1581, %v1594
    %v1596 = vpop.f32.mrf.mxu0
    %v1597 = vadd.f32 %v1583, %v1596
    %1598 = vdwg.mxu0
    %v1600 = vrot.slane %v1595, 2
    %v1602 = vmax.f32 %v1595, %v1600
    %v1603 = vld [vmem:[%s6] sm:$0x1]
    %v1605 = vperm.slane %v1603, 0
    %v1607 = vadd.f32 %v1602, %v1605
    %v1608 = vmax.f32 %v1607, 0.0
    %v1610 = vrot.slane %v1597, 2
    %v1612 = vmax.f32 %v1597, %v1610
    %v1613 = vadd.f32 %v1612, %v1605
    %v1614 = vmax.f32 %v1613, 0.0
    %v1616 = vrot.slane %v1608, 4
    %v1619 = vrot.slane %v1614, 4
    %v1621 = vpack.c.bf16 %v1608, %v1608
    %v1622 = vpack.c.bf16 %v1616, %v1616
    %v1623 = vpack.c.bf16 %v1614, %v1614
    %v1624 = vpack.c.bf16 %v1619, %v1619
    %v1625 = vld [vmem:[#allocation7] sm:$0xff]
    %v1626 = vld [vmem:[#allocation7 + $0x8] sm:$0xff]
    %v1627 = vld [vmem:[#allocation7 + $0x10] sm:$0xff]
    %v1628 = vld [vmem:[#allocation7 + $0x18] sm:$0xff]
    %v1629 = vld [vmem:[#allocation7 + $0x20] sm:$0xff]
    %v1630 = vld [vmem:[#allocation7 + $0x28] sm:$0xff]
    %v1631 = vld [vmem:[#allocation7 + $0x30] sm:$0xff]
    %v1632 = vld [vmem:[#allocation7 + $0x38] sm:$0xff]
    %v1633 = vld [vmem:[#allocation7 + $0x40] sm:$0xff]
    %v1634 = vld [vmem:[#allocation7 + $0x48] sm:$0xff]
    %v1635 = vld [vmem:[#allocation7 + $0x50] sm:$0xff]
    %v1636 = vld [vmem:[#allocation7 + $0x58] sm:$0xff]
    %v1637 = vld [vmem:[#allocation7 + $0x60] sm:$0xff]
    %v1638 = vld [vmem:[#allocation7 + $0x68] sm:$0xff]
    %v1639 = vld [vmem:[#allocation7 + $0x70] sm:$0xff]
    %v1640 = vld [vmem:[#allocation7 + $0x78] sm:$0xff]
    %v1641 = vld [vmem:[#allocation7 + $0x80] sm:$0xff]
    %v1642 = vld [vmem:[#allocation7 + $0x88] sm:$0xff]
    %v1643 = vld [vmem:[#allocation7 + $0x90] sm:$0xff]
    %v1644 = vld [vmem:[#allocation7 + $0x98] sm:$0xff]
    %v1645 = vld [vmem:[#allocation7 + $0xa0] sm:$0xff]
    %v1646 = vld [vmem:[#allocation7 + $0xa8] sm:$0xff]
    %v1647 = vld [vmem:[#allocation7 + $0xb0] sm:$0xff]
    %v1648 = vld [vmem:[#allocation7 + $0xb8] sm:$0xff]
    %v1649 = vld [vmem:[#allocation7 + $0xc0] sm:$0xff]
    %v1650 = vld [vmem:[#allocation7 + $0xc8] sm:$0xff]
    %v1651 = vld [vmem:[#allocation7 + $0xd0] sm:$0xff]
    %v1652 = vld [vmem:[#allocation7 + $0xd8] sm:$0xff]
    %v1653 = vld [vmem:[#allocation7 + $0xe0] sm:$0xff]
    %v1654 = vld [vmem:[#allocation7 + $0xe8] sm:$0xff]
    %v1655 = vld [vmem:[#allocation7 + $0xf0] sm:$0xff]
    %v1656 = vld [vmem:[#allocation7 + $0xf8] sm:$0xff]
    %v1657 = vld [vmem:[#allocation7 + $0x100] sm:$0xff]
    %v1658 = vld [vmem:[#allocation7 + $0x108] sm:$0xff]
    %v1659 = vld [vmem:[#allocation7 + $0x110] sm:$0xff]
    %v1660 = vld [vmem:[#allocation7 + $0x118] sm:$0xff]
    %v1661 = vld [vmem:[#allocation7 + $0x120] sm:$0xff]
    %v1662 = vld [vmem:[#allocation7 + $0x128] sm:$0xff]
    %v1663 = vld [vmem:[#allocation7 + $0x130] sm:$0xff]
    %v1664 = vld [vmem:[#allocation7 + $0x138] sm:$0xff]
    %v1665 = vld [vmem:[#allocation7 + $0x140] sm:$0xff]
    %v1666 = vld [vmem:[#allocation7 + $0x148] sm:$0xff]
    %v1667 = vld [vmem:[#allocation7 + $0x150] sm:$0xff]
    %v1668 = vld [vmem:[#allocation7 + $0x158] sm:$0xff]
    %v1669 = vld [vmem:[#allocation7 + $0x160] sm:$0xff]
    %v1670 = vld [vmem:[#allocation7 + $0x168] sm:$0xff]
    %v1671 = vld [vmem:[#allocation7 + $0x170] sm:$0xff]
    %v1672 = vld [vmem:[#allocation7 + $0x178] sm:$0xff]
    %v1673 = vld [vmem:[#allocation7 + $0x180] sm:$0xff]
    %v1674 = vld [vmem:[#allocation7 + $0x188] sm:$0xff]
    %v1675 = vld [vmem:[#allocation7 + $0x190] sm:$0xff]
    %v1676 = vld [vmem:[#allocation7 + $0x198] sm:$0xff]
    %v1677 = vld [vmem:[#allocation7 + $0x1a0] sm:$0xff]
    %v1678 = vld [vmem:[#allocation7 + $0x1a8] sm:$0xff]
    %v1679 = vld [vmem:[#allocation7 + $0x1b0] sm:$0xff]
    %v1680 = vld [vmem:[#allocation7 + $0x1b8] sm:$0xff]
    %v1681 = vld [vmem:[#allocation7 + $0x1c0] sm:$0xff]
    %v1682 = vld [vmem:[#allocation7 + $0x1c8] sm:$0xff]
    %v1683 = vld [vmem:[#allocation7 + $0x1d0] sm:$0xff]
    %v1684 = vld [vmem:[#allocation7 + $0x1d8] sm:$0xff]
    %v1685 = vld [vmem:[#allocation7 + $0x1e0] sm:$0xff]
    %v1686 = vld [vmem:[#allocation7 + $0x1e8] sm:$0xff]
    %v1687 = vld [vmem:[#allocation7 + $0x1f0] sm:$0xff]
    %v1688 = vld [vmem:[#allocation7 + $0x1f8] sm:$0xff]
    %v1689 = vld [vmem:[%s8] sm:$0x3]
    %v1691 = vperm.slane %v1689, 0
    %v1692 = vperm.slane %v1689, 1
    %v1759 = vunpack.c.l.b16 %v1625
    %v1760 = vunpack.c.h.b16 %v1625
    %v1761 = vunpack.c.l.b16 %v1626
    %v1762 = vunpack.c.h.b16 %v1626
    %v1763 = vunpack.c.l.b16 %v1627
    %v1764 = vunpack.c.h.b16 %v1627
    %v1765 = vunpack.c.l.b16 %v1628
    %v1766 = vunpack.c.h.b16 %v1628
    %v1767 = vunpack.c.l.b16 %v1629
    %v1768 = vunpack.c.h.b16 %v1629
    %v1769 = vunpack.c.l.b16 %v1630
    %v1770 = vunpack.c.h.b16 %v1630
    %v1771 = vunpack.c.l.b16 %v1631
    %v1772 = vunpack.c.h.b16 %v1631
    %v1773 = vunpack.c.l.b16 %v1632
    %v1774 = vunpack.c.h.b16 %v1632
    %v1775 = vunpack.c.l.b16 %v1633
    %v1776 = vunpack.c.h.b16 %v1633
    %v1777 = vunpack.c.l.b16 %v1634
    %v1778 = vunpack.c.h.b16 %v1634
    %v1779 = vunpack.c.l.b16 %v1635
    %v1780 = vunpack.c.h.b16 %v1635
    %v1781 = vunpack.c.l.b16 %v1636
    %v1782 = vunpack.c.h.b16 %v1636
    %v1783 = vunpack.c.l.b16 %v1637
    %v1784 = vunpack.c.h.b16 %v1637
    %v1785 = vunpack.c.l.b16 %v1638
    %v1786 = vunpack.c.h.b16 %v1638
    %v1787 = vunpack.c.l.b16 %v1639
    %v1788 = vunpack.c.h.b16 %v1639
    %v1789 = vunpack.c.l.b16 %v1640
    %v1790 = vunpack.c.h.b16 %v1640
    %v1791 = vunpack.c.l.b16 %v1641
    %v1792 = vunpack.c.h.b16 %v1641
    %v1793 = vunpack.c.l.b16 %v1642
    %v1794 = vunpack.c.h.b16 %v1642
    %v1795 = vunpack.c.l.b16 %v1643
    %v1796 = vunpack.c.h.b16 %v1643
    %v1797 = vunpack.c.l.b16 %v1644
    %v1798 = vunpack.c.h.b16 %v1644
    %v1799 = vunpack.c.l.b16 %v1645
    %v1800 = vunpack.c.h.b16 %v1645
    %v1801 = vunpack.c.l.b16 %v1646
    %v1802 = vunpack.c.h.b16 %v1646
    %v1803 = vunpack.c.l.b16 %v1647
    %v1804 = vunpack.c.h.b16 %v1647
    %v1805 = vunpack.c.l.b16 %v1648
    %v1806 = vunpack.c.h.b16 %v1648
    %v1807 = vunpack.c.l.b16 %v1649
    %v1808 = vunpack.c.h.b16 %v1649
    %v1809 = vunpack.c.l.b16 %v1650
    %v1810 = vunpack.c.h.b16 %v1650
    %v1811 = vunpack.c.l.b16 %v1651
    %v1812 = vunpack.c.h.b16 %v1651
    %v1813 = vunpack.c.l.b16 %v1652
    %v1814 = vunpack.c.h.b16 %v1652
    %v1815 = vunpack.c.l.b16 %v1653
    %v1816 = vunpack.c.h.b16 %v1653
    %v1817 = vunpack.c.l.b16 %v1654
    %v1818 = vunpack.c.h.b16 %v1654
    %v1819 = vunpack.c.l.b16 %v1655
    %v1820 = vunpack.c.h.b16 %v1655
    %v1821 = vunpack.c.l.b16 %v1656
    %v1822 = vunpack.c.h.b16 %v1656
    %v1823 = vunpack.c.l.b16 %v1657
    %v1824 = vunpack.c.h.b16 %v1657
    %v1825 = vunpack.c.l.b16 %v1658
    %v1826 = vunpack.c.h.b16 %v1658
    %v1827 = vunpack.c.l.b16 %v1659
    %v1828 = vunpack.c.h.b16 %v1659
    %v1829 = vunpack.c.l.b16 %v1660
    %v1830 = vunpack.c.h.b16 %v1660
    %v1831 = vunpack.c.l.b16 %v1661
    %v1832 = vunpack.c.h.b16 %v1661
    %v1833 = vunpack.c.l.b16 %v1662
    %v1834 = vunpack.c.h.b16 %v1662
    %v1835 = vunpack.c.l.b16 %v1663
    %v1836 = vunpack.c.h.b16 %v1663
    %v1837 = vunpack.c.l.b16 %v1664
    %v1838 = vunpack.c.h.b16 %v1664
    %v1839 = vunpack.c.l.b16 %v1665
    %v1840 = vunpack.c.h.b16 %v1665
    %v1841 = vunpack.c.l.b16 %v1666
    %v1842 = vunpack.c.h.b16 %v1666
    %v1843 = vunpack.c.l.b16 %v1667
    %v1844 = vunpack.c.h.b16 %v1667
    %v1845 = vunpack.c.l.b16 %v1668
    %v1846 = vunpack.c.h.b16 %v1668
    %v1847 = vunpack.c.l.b16 %v1669
    %v1848 = vunpack.c.h.b16 %v1669
    %v1849 = vunpack.c.l.b16 %v1670
    %v1850 = vunpack.c.h.b16 %v1670
    %v1851 = vunpack.c.l.b16 %v1671
    %v1852 = vunpack.c.h.b16 %v1671
    %v1853 = vunpack.c.l.b16 %v1672
    %v1854 = vunpack.c.h.b16 %v1672
    %v1855 = vunpack.c.l.b16 %v1673
    %v1856 = vunpack.c.h.b16 %v1673
    %v1857 = vunpack.c.l.b16 %v1674
    %v1858 = vunpack.c.h.b16 %v1674
    %v1859 = vunpack.c.l.b16 %v1675
    %v1860 = vunpack.c.h.b16 %v1675
    %v1861 = vunpack.c.l.b16 %v1676
    %v1862 = vunpack.c.h.b16 %v1676
    %v1863 = vunpack.c.l.b16 %v1677
    %v1864 = vunpack.c.h.b16 %v1677
    %v1865 = vunpack.c.l.b16 %v1678
    %v1866 = vunpack.c.h.b16 %v1678
    %v1867 = vunpack.c.l.b16 %v1679
    %v1868 = vunpack.c.h.b16 %v1679
    %v1869 = vunpack.c.l.b16 %v1680
    %v1870 = vunpack.c.h.b16 %v1680
    %v1871 = vunpack.c.l.b16 %v1681
    %v1872 = vunpack.c.h.b16 %v1681
    %v1873 = vunpack.c.l.b16 %v1682
    %v1874 = vunpack.c.h.b16 %v1682
    %v1875 = vunpack.c.l.b16 %v1683
    %v1876 = vunpack.c.h.b16 %v1683
    %v1877 = vunpack.c.l.b16 %v1684
    %v1878 = vunpack.c.h.b16 %v1684
    %v1879 = vunpack.c.l.b16 %v1685
    %v1880 = vunpack.c.h.b16 %v1685
    %v1881 = vunpack.c.l.b16 %v1686
    %v1882 = vunpack.c.h.b16 %v1686
    %v1883 = vunpack.c.l.b16 %v1687
    %v1884 = vunpack.c.h.b16 %v1687
    %v1885 = vunpack.c.l.b16 %v1688
    %v1886 = vunpack.c.h.b16 %v1688
    %v1887 = vpack.c.b16 %v1761, %v1759
    %v1888 = vpack.c.b16 %v1762, %v1760
    %v1889 = vpack.c.b16 %v1765, %v1763
    %v1890 = vpack.c.b16 %v1766, %v1764
    %v1891 = vpack.c.b16 %v1769, %v1767
    %v1892 = vpack.c.b16 %v1770, %v1768
    %v1893 = vpack.c.b16 %v1773, %v1771
    %v1894 = vpack.c.b16 %v1774, %v1772
    %v1895 = vpack.c.b16 %v1777, %v1775
    %v1896 = vpack.c.b16 %v1778, %v1776
    %v1897 = vpack.c.b16 %v1781, %v1779
    %v1898 = vpack.c.b16 %v1782, %v1780
    %v1899 = vpack.c.b16 %v1785, %v1783
    %v1900 = vpack.c.b16 %v1786, %v1784
    %v1901 = vpack.c.b16 %v1789, %v1787
    %v1902 = vpack.c.b16 %v1790, %v1788
    %v1903 = vpack.c.b16 %v1793, %v1791
    %v1904 = vpack.c.b16 %v1794, %v1792
    %v1905 = vpack.c.b16 %v1797, %v1795
    %v1906 = vpack.c.b16 %v1798, %v1796
    %v1907 = vpack.c.b16 %v1801, %v1799
    %v1908 = vpack.c.b16 %v1802, %v1800
    %v1909 = vpack.c.b16 %v1805, %v1803
    %v1910 = vpack.c.b16 %v1806, %v1804
    %v1911 = vpack.c.b16 %v1809, %v1807
    %v1912 = vpack.c.b16 %v1810, %v1808
    %v1913 = vpack.c.b16 %v1813, %v1811
    %v1914 = vpack.c.b16 %v1814, %v1812
    %v1915 = vpack.c.b16 %v1817, %v1815
    %v1916 = vpack.c.b16 %v1818, %v1816
    %v1917 = vpack.c.b16 %v1821, %v1819
    %v1918 = vpack.c.b16 %v1822, %v1820
    %v1919 = vpack.c.b16 %v1825, %v1823
    %v1920 = vpack.c.b16 %v1826, %v1824
    %v1921 = vpack.c.b16 %v1829, %v1827
    %v1922 = vpack.c.b16 %v1830, %v1828
    %v1923 = vpack.c.b16 %v1833, %v1831
    %v1924 = vpack.c.b16 %v1834, %v1832
    %v1925 = vpack.c.b16 %v1837, %v1835
    %v1926 = vpack.c.b16 %v1838, %v1836
    %v1927 = vpack.c.b16 %v1841, %v1839
    %v1928 = vpack.c.b16 %v1842, %v1840
    %v1929 = vpack.c.b16 %v1845, %v1843
    %v1930 = vpack.c.b16 %v1846, %v1844
    %v1931 = vpack.c.b16 %v1849, %v1847
    %v1932 = vpack.c.b16 %v1850, %v1848
    %v1933 = vpack.c.b16 %v1853, %v1851
    %v1934 = vpack.c.b16 %v1854, %v1852
    %v1935 = vpack.c.b16 %v1857, %v1855
    %v1936 = vpack.c.b16 %v1858, %v1856
    %v1937 = vpack.c.b16 %v1861, %v1859
    %v1938 = vpack.c.b16 %v1862, %v1860
    %v1939 = vpack.c.b16 %v1865, %v1863
    %v1940 = vpack.c.b16 %v1866, %v1864
    %v1941 = vpack.c.b16 %v1869, %v1867
    %v1942 = vpack.c.b16 %v1870, %v1868
    %v1943 = vpack.c.b16 %v1873, %v1871
    %v1944 = vpack.c.b16 %v1874, %v1872
    %v1945 = vpack.c.b16 %v1877, %v1875
    %v1946 = vpack.c.b16 %v1878, %v1876
    %v1947 = vpack.c.b16 %v1881, %v1879
    %v1948 = vpack.c.b16 %v1882, %v1880
    %v1949 = vpack.c.b16 %v1885, %v1883
    %v1950 = vpack.c.b16 %v1886, %v1884
    %2015 = vmatpush.bf16.msra.mxu0 %v1901
    %2016 = vmatpush.bf16.msra.mxu0 %v1899
    %2017 = vmatpush.bf16.msra.mxu0 %v1897
    %2018 = vmatpush.bf16.msra.mxu0 %v1895
    %2019 = vmatpush.bf16.msra.mxu0 %v1893
    %2020 = vmatpush.bf16.msra.mxu0 %v1891
    %2021 = vmatpush.bf16.msra.mxu0 %v1889
    %2022 = vmatpush.bf16.msra.mxu0 %v1887
    %2023 = vmatmul.bf16.gmra.mxu0 %v1621
    %v2024 = vpop.f32.mrf.mxu0
    %v2025 = vadd.f32 %v1691, %v2024
    %v2026 = vpop.f32.mrf.mxu0
    %2027 = vdwg.mxu0
    %2028 = vmatpush.bf16.msra.mxu0 %v1917
    %2029 = vmatpush.bf16.msra.mxu0 %v1915
    %2030 = vmatpush.bf16.msra.mxu0 %v1913
    %2031 = vmatpush.bf16.msra.mxu0 %v1911
    %2032 = vmatpush.bf16.msra.mxu0 %v1909
    %2033 = vmatpush.bf16.msra.mxu0 %v1907
    %2034 = vmatpush.bf16.msra.mxu0 %v1905
    %2035 = vmatpush.bf16.msra.mxu0 %v1903
    %2036 = vmatmul.bf16.gmra.mxu0 %v1622
    %v2037 = vpop.f32.mrf.mxu0
    %v2038 = vadd.f32 %v2025, %v2037
    %v2039 = vpop.f32.mrf.mxu0
    %2040 = vdwg.mxu0
    %2041 = vmatpush.bf16.msra.mxu0 %v1933
    %2042 = vmatpush.bf16.msra.mxu0 %v1931
    %2043 = vmatpush.bf16.msra.mxu0 %v1929
    %2044 = vmatpush.bf16.msra.mxu0 %v1927
    %2045 = vmatpush.bf16.msra.mxu0 %v1925
    %2046 = vmatpush.bf16.msra.mxu0 %v1923
    %2047 = vmatpush.bf16.msra.mxu0 %v1921
    %2048 = vmatpush.bf16.msra.mxu0 %v1919
    %2049 = vmatmul.bf16.gmra.mxu0 %v1623
    %v2050 = vpop.f32.mrf.mxu0
    %v2051 = vadd.f32 %v2038, %v2050
    %v2052 = vpop.f32.mrf.mxu0
    %2053 = vdwg.mxu0
    %2054 = vmatpush.bf16.msra.mxu0 %v1949
    %2055 = vmatpush.bf16.msra.mxu0 %v1947
    %2056 = vmatpush.bf16.msra.mxu0 %v1945
    %2057 = vmatpush.bf16.msra.mxu0 %v1943
    %2058 = vmatpush.bf16.msra.mxu0 %v1941
    %2059 = vmatpush.bf16.msra.mxu0 %v1939
    %2060 = vmatpush.bf16.msra.mxu0 %v1937
    %2061 = vmatpush.bf16.msra.mxu0 %v1935
    %2062 = vmatmul.bf16.gmra.mxu0 %v1624
    %v2063 = vpop.f32.mrf.mxu0
    %v2064 = vadd.f32 %v2051, %v2063
    %v2065 = vpop.f32.mrf.mxu0
    %2066 = vdwg.mxu0
    %2067 = vmatpush.bf16.msra.mxu0 %v1902
    %2068 = vmatpush.bf16.msra.mxu0 %v1900
    %2069 = vmatpush.bf16.msra.mxu0 %v1898
    %2070 = vmatpush.bf16.msra.mxu0 %v1896
    %2071 = vmatpush.bf16.msra.mxu0 %v1894
    %2072 = vmatpush.bf16.msra.mxu0 %v1892
    %2073 = vmatpush.bf16.msra.mxu0 %v1890
    %2074 = vmatpush.bf16.msra.mxu0 %v1888
    %2075 = vmatmul.bf16.gmra.mxu0 %v1621
    %v2076 = vpop.f32.mrf.mxu0
    %v2077 = vadd.f32 %v1692, %v2076
    %v2078 = vpop.f32.mrf.mxu0
    %2079 = vdwg.mxu0
    %2080 = vmatpush.bf16.msra.mxu0 %v1918
    %2081 = vmatpush.bf16.msra.mxu0 %v1916
    %2082 = vmatpush.bf16.msra.mxu0 %v1914
    %2083 = vmatpush.bf16.msra.mxu0 %v1912
    %2084 = vmatpush.bf16.msra.mxu0 %v1910
    %2085 = vmatpush.bf16.msra.mxu0 %v1908
    %2086 = vmatpush.bf16.msra.mxu0 %v1906
    %2087 = vmatpush.bf16.msra.mxu0 %v1904
    %2088 = vmatmul.bf16.gmra.mxu0 %v1622
    %v2089 = vpop.f32.mrf.mxu0
    %v2090 = vadd.f32 %v2077, %v2089
    %v2091 = vpop.f32.mrf.mxu0
    %2092 = vdwg.mxu0
    %2093 = vmatpush.bf16.msra.mxu0 %v1934
    %2094 = vmatpush.bf16.msra.mxu0 %v1932
    %2095 = vmatpush.bf16.msra.mxu0 %v1930
    %2096 = vmatpush.bf16.msra.mxu0 %v1928
    %2097 = vmatpush.bf16.msra.mxu0 %v1926
    %2098 = vmatpush.bf16.msra.mxu0 %v1924
    %2099 = vmatpush.bf16.msra.mxu0 %v1922
    %2100 = vmatpush.bf16.msra.mxu0 %v1920
    %2101 = vmatmul.bf16.gmra.mxu0 %v1623
    %v2102 = vpop.f32.mrf.mxu0
    %v2103 = vadd.f32 %v2090, %v2102
    %v2104 = vpop.f32.mrf.mxu0
    %2105 = vdwg.mxu0
    %2106 = vmatpush.bf16.msra.mxu0 %v1950
    %2107 = vmatpush.bf16.msra.mxu0 %v1948
    %2108 = vmatpush.bf16.msra.mxu0 %v1946
    %2109 = vmatpush.bf16.msra.mxu0 %v1944
    %2110 = vmatpush.bf16.msra.mxu0 %v1942
    %2111 = vmatpush.bf16.msra.mxu0 %v1940
    %2112 = vmatpush.bf16.msra.mxu0 %v1938
    %2113 = vmatpush.bf16.msra.mxu0 %v1936
    %2114 = vmatmul.bf16.gmra.mxu0 %v1624
    %v2115 = vpop.f32.mrf.mxu0
    %v2116 = vadd.f32 %v2103, %v2115
    %v2117 = vpop.f32.mrf.mxu0
    %2118 = vdwg.mxu0
    %v2119 = vmax.f32 %v2064, 0.0
    %v2120 = vmax.f32 %v2116, 0.0
    %v2121 = vpack.c.bf16 %v2119, %v2119
    %v2122 = vpack.c.bf16 %v2120, %v2120
    %v2123 = vld [vmem:[%s9] sm:$0xf]
    %v2124 = vld [vmem:[%s9 + $0x4] sm:$0xf]
    %v2125 = vld [vmem:[%s9 + $0x8] sm:$0xf]
    %v2126 = vld [vmem:[%s9 + $0xc] sm:$0xf]
    %v2127 = vld [vmem:[%s9 + $0x10] sm:$0xf]
    %v2128 = vld [vmem:[%s9 + $0x14] sm:$0xf]
    %v2129 = vld [vmem:[%s9 + $0x18] sm:$0xf]
    %v2130 = vld [vmem:[%s9 + $0x1c] sm:$0xf]
    %v2131 = vld [vmem:[%s9 + $0x20] sm:$0xf]
    %v2132 = vld [vmem:[%s9 + $0x24] sm:$0xf]
    %v2133 = vld [vmem:[%s9 + $0x28] sm:$0xf]
    %v2134 = vld [vmem:[%s9 + $0x2c] sm:$0xf]
    %v2135 = vld [vmem:[%s9 + $0x30] sm:$0xf]
    %v2136 = vld [vmem:[%s9 + $0x34] sm:$0xf]
    %v2137 = vld [vmem:[%s9 + $0x38] sm:$0xf]
    %v2138 = vld [vmem:[%s9 + $0x3c] sm:$0xf]
    %v2139 = vld [vmem:[%s9 + $0x40] sm:$0xf]
    %v2140 = vld [vmem:[%s9 + $0x44] sm:$0xf]
    %v2141 = vld [vmem:[%s9 + $0x48] sm:$0xf]
    %v2142 = vld [vmem:[%s9 + $0x4c] sm:$0xf]
    %v2143 = vld [vmem:[%s9 + $0x50] sm:$0xf]
    %v2144 = vld [vmem:[%s9 + $0x54] sm:$0xf]
    %v2145 = vld [vmem:[%s9 + $0x58] sm:$0xf]
    %v2146 = vld [vmem:[%s9 + $0x5c] sm:$0xf]
    %v2147 = vld [vmem:[%s9 + $0x60] sm:$0xf]
    %v2148 = vld [vmem:[%s9 + $0x64] sm:$0xf]
    %v2149 = vld [vmem:[%s9 + $0x68] sm:$0xf]
    %v2150 = vld [vmem:[%s9 + $0x6c] sm:$0xf]
    %v2151 = vld [vmem:[%s9 + $0x70] sm:$0xf]
    %v2152 = vld [vmem:[%s9 + $0x74] sm:$0xf]
    %v2153 = vld [vmem:[%s9 + $0x78] sm:$0xf]
    %v2154 = vld [vmem:[%s9 + $0x7c] sm:$0xf]
    %v2155 = vld [vmem:[%s10] sm:$0x1]
    %v2157 = vperm.slane %v2155, 0
    %v2191 = vunpack.c.l.b16 %v2123
    %v2192 = vunpack.c.l.b16 %v2124
    %v2193 = vunpack.c.l.b16 %v2125
    %v2194 = vunpack.c.l.b16 %v2126
    %v2195 = vunpack.c.l.b16 %v2127
    %v2196 = vunpack.c.l.b16 %v2128
    %v2197 = vunpack.c.l.b16 %v2129
    %v2198 = vunpack.c.l.b16 %v2130
    %v2199 = vunpack.c.l.b16 %v2131
    %v2200 = vunpack.c.l.b16 %v2132
    %v2201 = vunpack.c.l.b16 %v2133
    %v2202 = vunpack.c.l.b16 %v2134
    %v2203 = vunpack.c.l.b16 %v2135
    %v2204 = vunpack.c.l.b16 %v2136
    %v2205 = vunpack.c.l.b16 %v2137
    %v2206 = vunpack.c.l.b16 %v2138
    %v2207 = vunpack.c.l.b16 %v2139
    %v2208 = vunpack.c.l.b16 %v2140
    %v2209 = vunpack.c.l.b16 %v2141
    %v2210 = vunpack.c.l.b16 %v2142
    %v2211 = vunpack.c.l.b16 %v2143
    %v2212 = vunpack.c.l.b16 %v2144
    %v2213 = vunpack.c.l.b16 %v2145
    %v2214 = vunpack.c.l.b16 %v2146
    %v2215 = vunpack.c.l.b16 %v2147
    %v2216 = vunpack.c.l.b16 %v2148
    %v2217 = vunpack.c.l.b16 %v2149
    %v2218 = vunpack.c.l.b16 %v2150
    %v2219 = vunpack.c.l.b16 %v2151
    %v2220 = vunpack.c.l.b16 %v2152
    %v2221 = vunpack.c.l.b16 %v2153
    %v2222 = vunpack.c.l.b16 %v2154
    %v2223 = vpack.c.b16 %v2192, %v2191
    %v2224 = vpack.c.b16 %v2194, %v2193
    %v2225 = vpack.c.b16 %v2196, %v2195
    %v2226 = vpack.c.b16 %v2198, %v2197
    %v2227 = vpack.c.b16 %v2200, %v2199
    %v2228 = vpack.c.b16 %v2202, %v2201
    %v2229 = vpack.c.b16 %v2204, %v2203
    %v2230 = vpack.c.b16 %v2206, %v2205
    %v2231 = vpack.c.b16 %v2208, %v2207
    %v2232 = vpack.c.b16 %v2210, %v2209
    %v2233 = vpack.c.b16 %v2212, %v2211
    %v2234 = vpack.c.b16 %v2214, %v2213
    %v2235 = vpack.c.b16 %v2216, %v2215
    %v2236 = vpack.c.b16 %v2218, %v2217
    %v2237 = vpack.c.b16 %v2220, %v2219
    %v2238 = vpack.c.b16 %v2222, %v2221
    %2255 = vmatpush.bf16.msra.mxu0 %v2230
    %2256 = vmatpush.bf16.msra.mxu0 %v2229
    %2257 = vmatpush.bf16.msra.mxu0 %v2228
    %2258 = vmatpush.bf16.msra.mxu0 %v2227
    %2259 = vmatpush.bf16.msra.mxu0 %v2226
    %2260 = vmatpush.bf16.msra.mxu0 %v2225
    %2261 = vmatpush.bf16.msra.mxu0 %v2224
    %2262 = vmatpush.bf16.msra.mxu0 %v2223
    %2263 = vmatmul.bf16.gmra.mxu0 %v2121
    %v2264 = vpop.f32.mrf.mxu0
    %v2265 = vadd.f32 %v2157, %v2264
    %v2266 = vpop.f32.mrf.mxu0
    %2267 = vdwg.mxu0
    %2268 = vmatpush.bf16.msra.mxu0 %v2238
    %2269 = vmatpush.bf16.msra.mxu0 %v2237
    %2270 = vmatpush.bf16.msra.mxu0 %v2236
    %2271 = vmatpush.bf16.msra.mxu0 %v2235
    %2272 = vmatpush.bf16.msra.mxu0 %v2234
    %2273 = vmatpush.bf16.msra.mxu0 %v2233
    %2274 = vmatpush.bf16.msra.mxu0 %v2232
    %2275 = vmatpush.bf16.msra.mxu0 %v2231
    %2276 = vmatmul.bf16.gmra.mxu0 %v2122
    %v2277 = vpop.f32.mrf.mxu0
    %v2278 = vadd.f32 %v2265, %v2277
    %v2279 = vpop.f32.mrf.mxu0
    %2280 = vdwg.mxu0
    %v2281 = vmax.f32 %v2278, 0.0
    %v2282 = vpack.c.bf16 %v2281, %v2281
    %v2283 = vld [vmem:[%s11] sm:$0xf]
    %v2284 = vld [vmem:[%s11 + $0x4] sm:$0xf]
    %v2285 = vld [vmem:[%s11 + $0x8] sm:$0xf]
    %v2286 = vld [vmem:[%s11 + $0xc] sm:$0xf]
    %v2287 = vld [vmem:[%s11 + $0x10] sm:$0xf]
    %v2288 = vld [vmem:[%s11 + $0x14] sm:$0xf]
    %v2289 = vld [vmem:[%s11 + $0x18] sm:$0xf]
    %v2290 = vld [vmem:[%s11 + $0x1c] sm:$0xf]
    %v2291 = vld [vmem:[%s12] sm:$0x1]
    %v2293 = vperm.slane %v2291, 0
    %v2303 = vunpack.c.l.b16 %v2283
    %v2304 = vunpack.c.l.b16 %v2284
    %v2305 = vunpack.c.l.b16 %v2285
    %v2306 = vunpack.c.l.b16 %v2286
    %v2307 = vunpack.c.l.b16 %v2287
    %v2308 = vunpack.c.l.b16 %v2288
    %v2309 = vunpack.c.l.b16 %v2289
    %v2310 = vunpack.c.l.b16 %v2290
    %v2311 = vpack.c.b16 %v2304, %v2303
    %v2312 = vpack.c.b16 %v2306, %v2305
    %v2313 = vpack.c.b16 %v2308, %v2307
    %v2314 = vpack.c.b16 %v2310, %v2309
    %vm2319 = vcmask 523264
    %v2321 = vsel %vm2319, %v2282, 0
    %2323 = vmatpush.bf16.msra.mxu0 0
    %2324 = vmatpush.bf16.msra.mxu0 0
    %2325 = vmatpush.bf16.msra.mxu0 0
    %2326 = vmatpush.bf16.msra.mxu0 0
    %2327 = vmatpush.bf16.msra.mxu0 %v2314
    %2328 = vmatpush.bf16.msra.mxu0 %v2313
    %2329 = vmatpush.bf16.msra.mxu0 %v2312
    %2330 = vmatpush.bf16.msra.mxu0 %v2311
    %2331 = vmatmul.bf16.gmra.mxu0 %v2321
    %v2332 = vpop.f32.mrf.mxu0
    %v2333 = vadd.f32 %v2293, %v2332
    %v2334 = vpop.f32.mrf.mxu0
    %2335 = vdwg.mxu0
    %vm2336 = vcmask 33792
    %2337 = vst.msk [vmem:[#allocation8] sm:$0x3] %vm2336, %v2333
    // Predicated region
    $region66: #{tpu_custom_call.1} parent=1 // pred_check
      _
    $region67: #{tpu_custom_call.1} parent=1 // pred_check_branch
      %2339 = sbr.rel (0) target = $region69
    $region68: #{tpu_custom_call.1} parent=1 // pred_region
      %2341 = vsyncadd [#allocation4], 0
      %s2343 = sshll.u32 [#allocation8], 4
      %s2344 = int_to_ptr.vmem [resolvable:$true] %s2343
      %s2345 = sshll.u32 %s13, 4
      %s2346 = int_to_ptr.hbm [resolvable:$true] %s2345
      %2348 = dma.vmem_to_hbm [thread:$0]  %s2344, 32, %s2346, [#allocation4]
    $region69: #{tpu_custom_call.1} parent=1 // pred_fallthru
      _
    // Predicated region
    $region70: #{tpu_custom_call.1} parent=1 // pred_check
      _
    $region71: #{tpu_custom_call.1} parent=1 // pred_check_branch
      %2350 = sbr.rel (0) target = $region73
    $region72: #{tpu_custom_call.1} parent=1 // pred_region
      %2352 = dma.done [#allocation4], 32
    $region73: #{tpu_custom_call.1} parent=1 // pred_fallthru
      _
    %2353 = vsyncpa [#allocation3], 1
    %2354 = vsyncpa [#allocation6], 1
    %2355 = vsyncpa [#allocation4], 1

</llo_original>
